<compile_context>
chip_gen: v7x
topology: tpu7x:2x2x1
jax: 0.10.0
libtpu: 0.0.40
codegen_flags: <defaults>
</compile_context>

<pallas_src>
import functools
import math

import jax
import jax.numpy as jnp
import numpy as np
from jax import lax
from jax.experimental import pallas as pl
from jax.experimental.pallas import tpu as pltpu


# ----------------------------- Pallas kernel ------------------------------ #
def encoder_kernel(xq_ref, w1_ref, b1_ref, w2_ref, b2_ref, w3_ref, b3_ref,
                   wf1_ref, bf1_ref, wf2_ref, bf2_ref, wf3_ref, bf3_ref,
                   o_ref, *, L3):
    bf16 = jnp.bfloat16
    Mt = o_ref.shape[0]                      # Bt * L3 rows per grid step

    def mm(a, w_ref, b_ref, relu=True):
        y = jnp.dot(a, w_ref[...], preferred_element_type=jnp.float32) + b_ref[...]
        return jnp.maximum(y, 0.0) if relu else y

    # Rows that start a batch element: their "previous time step" is the conv
    # zero padding.  Computed once, reused by conv2 and conv3.
    rid = lax.broadcasted_iota(jnp.int32, (Mt, 128), 0)
    at_start = (rid % L3) == 0

    def prev_row_tail(v):
        # v: (Mt, 256) packed activations.  Returns (Mt, 128) holding lanes
        # 128:256 of the PREVIOUS row (zero at batch-element starts).
        tail = v[:, 128:256]                                   # tile-aligned
        shifted = jnp.concatenate(
            [jnp.zeros((1, 128), v.dtype), tail[:-1, :]], axis=0)
        return jnp.where(at_start, jnp.zeros_like(shifted), shifted)

    # conv1: quad-packed output  [h1[4m] | h1[4m+1] | h1[4m+2] | h1[4m+3]]
    h1 = mm(xq_ref[...], w1_ref, b1_ref).astype(bf16)          # (Mt, 256)
    # conv2: pair-packed output  [y2[2m] | y2[2m+1]]
    g2 = jnp.concatenate([h1, prev_row_tail(h1)], axis=-1)     # (Mt, 384)
    y2 = mm(g2, w2_ref, b2_ref).astype(bf16)                   # (Mt, 256)
    # conv3: natural order (one time step per row)
    g3 = jnp.concatenate([y2, prev_row_tail(y2)], axis=-1)     # (Mt, 384)
    h3 = mm(g3, w3_ref, b3_ref).astype(bf16)                   # (Mt, 256)
    # fully connected head
    f1 = mm(h3, wf1_ref, bf1_ref).astype(bf16)                 # (Mt, 128)
    f2 = mm(f1, wf2_ref, bf2_ref).astype(bf16)                 # (Mt, 128)
    o_ref[...] = mm(f2, wf3_ref, bf3_ref, relu=False).astype(o_ref.dtype)


# --------------------------- weight repacking ------------------------------ #
def _pack_weights(p):
    f32, bf16 = jnp.float32, jnp.bfloat16

    def tap(w, k):                       # (Cout, Cin, 3) -> (Cin, Cout), tap k
        return jnp.asarray(w[:, :, k], f32).T

    # conv1 quad matmul: input row = 6 window positions x 16 padded channels,
    # output row = 4 consecutive conv1 outputs (4 x 64 channels).
    W1 = jnp.zeros((128, 256), f32)
    for r in range(4):
        for k in range(3):
            j = r + k                    # window slot feeding output r, tap k
            W1 = W1.at[j * 16:j * 16 + 14, r * 64:(r + 1) * 64].set(tap(p['w1'], k))
    b1 = jnp.tile(jnp.asarray(p['b1'], f32), 4)[None]          # (1, 256)

    # conv2: g2 row = [h1[4m],h1[4m+1],h1[4m+2],h1[4m+3] | h1[4m-2],h1[4m-1]]
    #        out row = [y2[2m] | y2[2m+1]]   (h1[4m-2] rows stay zero)
    W2 = jnp.zeros((384, 256), f32)
    W2 = W2.at[0:64,      0:128].set(tap(p['w2'], 1))
    W2 = W2.at[64:128,    0:128].set(tap(p['w2'], 2))
    W2 = W2.at[320:384,   0:128].set(tap(p['w2'], 0))
    W2 = W2.at[64:128,  128:256].set(tap(p['w2'], 0))
    W2 = W2.at[128:192, 128:256].set(tap(p['w2'], 1))
    W2 = W2.at[192:256, 128:256].set(tap(p['w2'], 2))
    b2 = jnp.tile(jnp.asarray(p['b2'], f32), 2)[None]          # (1, 256)

    # conv3: g3 row = [y2[2p] | y2[2p+1] | y2[2p-1]]
    W3 = jnp.zeros((384, 256), f32)
    W3 = W3.at[0:128, :].set(tap(p['w3'], 1))
    W3 = W3.at[128:256, :].set(tap(p['w3'], 2))
    W3 = W3.at[256:384, :].set(tap(p['w3'], 0))
    b3 = jnp.asarray(p['b3'], f32)[None]                       # (1, 256)

    return (W1.astype(bf16), b1,
            W2.astype(bf16), b2,
            W3.astype(bf16), b3,
            jnp.asarray(p['wf1'], f32).T.astype(bf16), jnp.asarray(p['bf1'], f32)[None],
            jnp.asarray(p['wf2'], f32).T.astype(bf16), jnp.asarray(p['bf2'], f32)[None],
            jnp.asarray(p['wf3'], f32).T.astype(bf16), jnp.asarray(p['bf3'], f32)[None])


# ------------------------------- wrapper ----------------------------------- #
def encoder_r_forward(x, p, *, target_rows=1024):
    B, L, Cin = x.shape
    assert Cin == 14
    assert L % 4 == 0, "sequence length must be a multiple of 4"
    L3 = L // 4
    # TODO(synk): for very long sequences add an L-tiled grid axis with a
    # 1-row halo per conv instead of keeping the whole sequence resident.
    assert L3 <= 8192, "add L-tiling for very long sequences"

    # --- batch packing: Bt elements / grid step, Mt = Bt*L3 matmul rows / step
    bt_unit = 8 // math.gcd(L3, 8)               # keeps Mt a multiple of 8
    Bt = max(bt_unit, (max(1, target_rows // L3) // bt_unit) * bt_unit)
    Bt = min(Bt, ((B + bt_unit - 1) // bt_unit) * bt_unit)
    if (B + Bt - 1) // Bt < 2 and B >= 2 * bt_unit:
        Bt = max(bt_unit, ((B // 2) // bt_unit) * bt_unit)     # feed both v7x TCs
    Bp = ((B + Bt - 1) // Bt) * Bt
    Mt = Bt * L3
    grid = (Bp // Bt,)

    # --- conv1 im2col in the wrapper: 128-lane-dense bf16 rows
    # row (b, q) = [x[b, 4q-1], ..., x[b, 4q+4]] (6 slots x 16 padded channels)
    x16 = jnp.zeros((Bp, L + 2, 16), jnp.bfloat16)
    x16 = x16.at[:B, 1:L + 1, :14].set(x.astype(jnp.bfloat16))
    win = (jnp.arange(L3) * 4)[:, None] + jnp.arange(6)[None, :]       # (L3, 6)
    xq = x16[:, win, :].reshape(Bp, L3, 96)
    xq = jnp.pad(xq, ((0, 0), (0, 0), (0, 32))).reshape(Bp * L3, 128)

    consts = _pack_weights(p)

    in_specs = [pl.BlockSpec((Mt, 128), lambda g: (g, 0))] + \
               [pl.BlockSpec(c.shape, lambda g: (0, 0)) for c in consts]
    out_spec = pl.BlockSpec((Mt, 64), lambda g: (g, 0))
    out_shape = jax.ShapeDtypeStruct((Bp * L3, 64), jnp.float32)

    # --- cost estimate (true FLOPs of the packed formulation)
    kn = 128 * 256 + 384 * 256 + 384 * 256 + 256 * 128 + 128 * 128 + 128 * 64
    const_bytes = sum(int(c.size) * c.dtype.itemsize for c in consts)
    cost = pl.CostEstimate(
        flops=int(2 * Bp * L3 * kn), transcendentals=0,
        bytes_accessed=int(xq.size) * 2 + const_bytes + Bp * L3 * 64 * 4)

    # --- VMEM: ~4KB live per M row + double-buffered blocks/weights;
    #           clamp to [32, 48] MiB (safe on v5e/v6e 128MiB and v7x 64MiB).
    vmem_limit = int(min(48 << 20,
                         max(32 << 20, Mt * 4096 + 2 * const_bytes + (4 << 20))))

    kernel = functools.partial(encoder_kernel, L3=L3)
    out = pl.pallas_call(
        kernel,
        out_shape=out_shape,
        grid=grid,
        in_specs=in_specs,
        out_specs=out_spec,
        compiler_params=pltpu.CompilerParams(
            dimension_semantics=("parallel",),
            vmem_limit_bytes=vmem_limit),
        cost_estimate=cost,
    )(xq, *consts)

    return out.reshape(Bp, L3, 64)[:B]


# -------------------------- params / reference ----------------------------- #
def init_params(key):
    ks = jax.random.split(key, 12)

    def w(k, shape, fan_in):
        return jax.random.normal(k, shape, jnp.float32) / jnp.sqrt(float(fan_in))

    return {
        'w1': w(ks[0], (64, 14, 3), 14 * 3),    'b1': w(ks[1], (64,), 64),
        'w2': w(ks[2], (128, 64, 3), 64 * 3),   'b2': w(ks[3], (128,), 128),
        'w3': w(ks[4], (256, 128, 3), 128 * 3), 'b3': w(ks[5], (256,), 256),
        'wf1': w(ks[6], (128, 256), 256),       'bf1': w(ks[7], (128,), 128),
        'wf2': w(ks[8], (128, 128), 128),       'bf2': w(ks[9], (128,), 128),
        'wf3': w(ks[10], (64, 128), 128),       'bf3': w(ks[11], (64,), 64),
    }


def ref_forward(x, p):
    """Pure-JAX f32 reference matching the PyTorch forward exactly."""
    h = jnp.transpose(x, (0, 2, 1))            # (B, 14, L)  NCW

    def conv1d(h, w, b, stride):
        out = jax.lax.conv_general_dilated(
            h, w, window_strides=(stride,), padding=[(1, 1)],
            dimension_numbers=('NCH', 'OIH', 'NCH'))
        return out + b[None, :, None]

    h = jax.nn.relu(conv1d(h, p['w1'], p['b1'], 1))
    h = jax.nn.relu(conv1d(h, p['w2'], p['b2'], 2))
    h = jax.nn.relu(conv1d(h, p['w3'], p['b3'], 2))
    h = jnp.transpose(h, (0, 2, 1))            # (B, L/4, 256)
    h = jax.nn.relu(h @ p['wf1'].T + p['bf1'])
    h = jax.nn.relu(h @ p['wf2'].T + p['bf2'])
    return h @ p['wf3'].T + p['bf3']


if __name__ == "__main__":
    key = jax.random.PRNGKey(0)
    kx, kp = jax.random.split(key)
    B, L = 2, 16
    x = jax.random.normal(kx, (B, L, 14), jnp.float32)
    params = init_params(kp)

    out = jax.block_until_ready(encoder_r_forward(x, params))
    ref = ref_forward(x, params)
    # bf16 weights/activations (f32 accumulation) vs f32 reference.
    np.testing.assert_allclose(np.asarray(out), np.asarray(ref), rtol=5e-2, atol=5e-2)
    print("KERNEL_OK")
</pallas_src>

<mosaic_0001>
module attributes {stable_mosaic.version = 11 : i64} {
  func.func @encoder_kernel(%arg0: i32, %arg1: memref<8x128xbf16, #tpu.memory_space<vmem>>, %arg2: memref<128x256xbf16, #tpu.memory_space<vmem>>, %arg3: memref<1x256xf32, #tpu.memory_space<vmem>>, %arg4: memref<384x256xbf16, #tpu.memory_space<vmem>>, %arg5: memref<1x256xf32, #tpu.memory_space<vmem>>, %arg6: memref<384x256xbf16, #tpu.memory_space<vmem>>, %arg7: memref<1x256xf32, #tpu.memory_space<vmem>>, %arg8: memref<256x128xbf16, #tpu.memory_space<vmem>>, %arg9: memref<1x128xf32, #tpu.memory_space<vmem>>, %arg10: memref<128x128xbf16, #tpu.memory_space<vmem>>, %arg11: memref<1x128xf32, #tpu.memory_space<vmem>>, %arg12: memref<128x64xbf16, #tpu.memory_space<vmem>>, %arg13: memref<1x64xf32, #tpu.memory_space<vmem>>, %arg14: memref<8x64xf32, #tpu.memory_space<vmem>>) attributes {dimension_semantics = [#tpu.dimension_semantics<parallel>], iteration_bounds = array<i64: 1>, scalar_prefetch = 0 : i64, scratch_operands = 0 : i64, tpu.core_type = #tpu.core_type<tc>, window_params = [{transform_indices = @transform_0, window_bounds = array<i64: 8, 128>}, {pipeline_mode = #tpu.pipeline_mode<synchronous>, transform_indices = @transform_1, window_bounds = array<i64: 128, 256>}, {pipeline_mode = #tpu.pipeline_mode<synchronous>, transform_indices = @transform_2, window_bounds = array<i64: 1, 256>}, {pipeline_mode = #tpu.pipeline_mode<synchronous>, transform_indices = @transform_3, window_bounds = array<i64: 384, 256>}, {pipeline_mode = #tpu.pipeline_mode<synchronous>, transform_indices = @transform_4, window_bounds = array<i64: 1, 256>}, {pipeline_mode = #tpu.pipeline_mode<synchronous>, transform_indices = @transform_5, window_bounds = array<i64: 384, 256>}, {pipeline_mode = #tpu.pipeline_mode<synchronous>, transform_indices = @transform_6, window_bounds = array<i64: 1, 256>}, {pipeline_mode = #tpu.pipeline_mode<synchronous>, transform_indices = @transform_7, window_bounds = array<i64: 256, 128>}, {pipeline_mode = #tpu.pipeline_mode<synchronous>, transform_indices = @transform_8, window_bounds = array<i64: 1, 128>}, {pipeline_mode = #tpu.pipeline_mode<synchronous>, transform_indices = @transform_9, window_bounds = array<i64: 128, 128>}, {pipeline_mode = #tpu.pipeline_mode<synchronous>, transform_indices = @transform_10, window_bounds = array<i64: 1, 128>}, {pipeline_mode = #tpu.pipeline_mode<synchronous>, transform_indices = @transform_11, window_bounds = array<i64: 128, 64>}, {pipeline_mode = #tpu.pipeline_mode<synchronous>, transform_indices = @transform_12, window_bounds = array<i64: 1, 64>}, {transform_indices = @transform_13, window_bounds = array<i64: 8, 64>}]} {
    %0 = tpu.iota {dimensions = array<i32: 0>} : vector<8x128xi32>
    %c4_i32 = arith.constant 4 : i32
    %c0_i32 = arith.constant 0 : i32
    %1 = arith.cmpi eq, %c4_i32, %c0_i32 : i32
    %c1_i32 = arith.constant 1 : i32
    %2 = arith.select %1, %c1_i32, %c4_i32 : i32
    %3 = vector.broadcast %2 : i32 to vector<8x128xi32>
    %4 = arith.remsi %0, %3 : vector<8x128xi32>
    %c0_i32_0 = arith.constant 0 : i32
    %5 = vector.broadcast %c0_i32_0 : i32 to vector<8x128xi32>
    %6 = arith.cmpi ne, %4, %5 : vector<8x128xi32>
    %c0_i32_1 = arith.constant 0 : i32
    %7 = vector.broadcast %c0_i32_1 : i32 to vector<8x128xi32>
    %8 = arith.cmpi slt, %4, %7 : vector<8x128xi32>
    %c0_i32_2 = arith.constant 0 : i32
    %9 = arith.cmpi slt, %2, %c0_i32_2 : i32
    %10 = vector.broadcast %9 : i1 to vector<8x128xi1>
    %11 = vector.broadcast %10 : vector<8x128xi1> to vector<8x128xi1>
    %12 = arith.xori %8, %11 : vector<8x128xi1>
    %13 = arith.andi %12, %6 : vector<8x128xi1>
    %14 = vector.broadcast %2 : i32 to vector<8x128xi32>
    %15 = arith.addi %4, %14 : vector<8x128xi32>
    %16 = arith.select %13, %15, %4 : vector<8x128xi1>, vector<8x128xi32>
    %c0_i32_3 = arith.constant 0 : i32
    %17 = vector.broadcast %c0_i32_3 : i32 to vector<8x128xi32>
    %18 = arith.cmpi eq, %16, %17 : vector<8x128xi32>
    %c0 = arith.constant 0 : index
    %c0_4 = arith.constant 0 : index
    %19 = vector.load %arg1[%c0, %c0_4] : memref<8x128xbf16, #tpu.memory_space<vmem>>, vector<8x128xbf16>
    %c0_5 = arith.constant 0 : index
    %c0_6 = arith.constant 0 : index
    %20 = vector.load %arg2[%c0_5, %c0_6] : memref<128x256xbf16, #tpu.memory_space<vmem>>, vector<128x256xbf16>
    %cst = arith.constant dense<0.000000e+00> : vector<8x256xf32>
    %21 = tpu.matmul %19, %20, %cst {dimension_numbers = #tpu.dot_dimension_numbers<[1], [0], [0], [1], [0, 0, 1, 1], [], []>} : vector<8x128xbf16>, vector<128x256xbf16>, vector<8x256xf32> -> vector<8x256xf32>
    %c0_7 = arith.constant 0 : index
    %c0_8 = arith.constant 0 : index
    %22 = vector.load %arg3[%c0_7, %c0_8] : memref<1x256xf32, #tpu.memory_space<vmem>>, vector<1x256xf32>
    %23 = vector.broadcast %22 : vector<1x256xf32> to vector<8x256xf32>
    %24 = arith.addf %21, %23 : vector<8x256xf32>
    %cst_9 = arith.constant 0.000000e+00 : f32
    %25 = vector.broadcast %cst_9 : f32 to vector<8x256xf32>
    %26 = arith.maximumf %24, %25 : vector<8x256xf32>
    %27 = arith.truncf %26 : vector<8x256xf32> to vector<8x256xbf16>
    %28 = vector.extract_strided_slice %27 {offsets = [0, 128], sizes = [8, 128], strides = [1, 1]} : vector<8x256xbf16> to vector<8x128xbf16>
    %cst_10 = arith.constant 0.000000e+00 : bf16
    %29 = vector.broadcast %cst_10 : bf16 to vector<1x128xbf16>
    %30 = vector.extract_strided_slice %28 {offsets = [0, 0], sizes = [7, 128], strides = [1, 1]} : vector<8x128xbf16> to vector<7x128xbf16>
    %31 = tpu.concatenate %29, %30 in 0 : vector<1x128xbf16>, vector<7x128xbf16> -> vector<8x128xbf16>
    %cst_11 = arith.constant 0.000000e+00 : bf16
    %32 = vector.broadcast %cst_11 : bf16 to vector<8x128xbf16>
    %33 = arith.select %18, %32, %31 : vector<8x128xi1>, vector<8x128xbf16>
    %34 = tpu.concatenate %27, %33 in 1 : vector<8x256xbf16>, vector<8x128xbf16> -> vector<8x384xbf16>
    %c0_12 = arith.constant 0 : index
    %c0_13 = arith.constant 0 : index
    %35 = vector.load %arg4[%c0_12, %c0_13] : memref<384x256xbf16, #tpu.memory_space<vmem>>, vector<384x256xbf16>
    %cst_14 = arith.constant dense<0.000000e+00> : vector<8x256xf32>
    %36 = tpu.matmul %34, %35, %cst_14 {dimension_numbers = #tpu.dot_dimension_numbers<[1], [0], [0], [1], [0, 0, 1, 1], [], []>} : vector<8x384xbf16>, vector<384x256xbf16>, vector<8x256xf32> -> vector<8x256xf32>
    %c0_15 = arith.constant 0 : index
    %c0_16 = arith.constant 0 : index
    %37 = vector.load %arg5[%c0_15, %c0_16] : memref<1x256xf32, #tpu.memory_space<vmem>>, vector<1x256xf32>
    %38 = vector.broadcast %37 : vector<1x256xf32> to vector<8x256xf32>
    %39 = arith.addf %36, %38 : vector<8x256xf32>
    %cst_17 = arith.constant 0.000000e+00 : f32
    %40 = vector.broadcast %cst_17 : f32 to vector<8x256xf32>
    %41 = arith.maximumf %39, %40 : vector<8x256xf32>
    %42 = arith.truncf %41 : vector<8x256xf32> to vector<8x256xbf16>
    %43 = vector.extract_strided_slice %42 {offsets = [0, 128], sizes = [8, 128], strides = [1, 1]} : vector<8x256xbf16> to vector<8x128xbf16>
    %cst_18 = arith.constant 0.000000e+00 : bf16
    %44 = vector.broadcast %cst_18 : bf16 to vector<1x128xbf16>
    %45 = vector.extract_strided_slice %43 {offsets = [0, 0], sizes = [7, 128], strides = [1, 1]} : vector<8x128xbf16> to vector<7x128xbf16>
    %46 = tpu.concatenate %44, %45 in 0 : vector<1x128xbf16>, vector<7x128xbf16> -> vector<8x128xbf16>
    %cst_19 = arith.constant 0.000000e+00 : bf16
    %47 = vector.broadcast %cst_19 : bf16 to vector<8x128xbf16>
    %48 = arith.select %18, %47, %46 : vector<8x128xi1>, vector<8x128xbf16>
    %49 = tpu.concatenate %42, %48 in 1 : vector<8x256xbf16>, vector<8x128xbf16> -> vector<8x384xbf16>
    %c0_20 = arith.constant 0 : index
    %c0_21 = arith.constant 0 : index
    %50 = vector.load %arg6[%c0_20, %c0_21] : memref<384x256xbf16, #tpu.memory_space<vmem>>, vector<384x256xbf16>
    %cst_22 = arith.constant dense<0.000000e+00> : vector<8x256xf32>
    %51 = tpu.matmul %49, %50, %cst_22 {dimension_numbers = #tpu.dot_dimension_numbers<[1], [0], [0], [1], [0, 0, 1, 1], [], []>} : vector<8x384xbf16>, vector<384x256xbf16>, vector<8x256xf32> -> vector<8x256xf32>
    %c0_23 = arith.constant 0 : index
    %c0_24 = arith.constant 0 : index
    %52 = vector.load %arg7[%c0_23, %c0_24] : memref<1x256xf32, #tpu.memory_space<vmem>>, vector<1x256xf32>
    %53 = vector.broadcast %52 : vector<1x256xf32> to vector<8x256xf32>
    %54 = arith.addf %51, %53 : vector<8x256xf32>
    %cst_25 = arith.constant 0.000000e+00 : f32
    %55 = vector.broadcast %cst_25 : f32 to vector<8x256xf32>
    %56 = arith.maximumf %54, %55 : vector<8x256xf32>
    %57 = arith.truncf %56 : vector<8x256xf32> to vector<8x256xbf16>
    %c0_26 = arith.constant 0 : index
    %c0_27 = arith.constant 0 : index
    %58 = vector.load %arg8[%c0_26, %c0_27] : memref<256x128xbf16, #tpu.memory_space<vmem>>, vector<256x128xbf16>
    %cst_28 = arith.constant dense<0.000000e+00> : vector<8x128xf32>
    %59 = tpu.matmul %57, %58, %cst_28 {dimension_numbers = #tpu.dot_dimension_numbers<[1], [0], [0], [1], [0, 0, 1, 1], [], []>} : vector<8x256xbf16>, vector<256x128xbf16>, vector<8x128xf32> -> vector<8x128xf32>
    %c0_29 = arith.constant 0 : index
    %c0_30 = arith.constant 0 : index
    %60 = vector.load %arg9[%c0_29, %c0_30] : memref<1x128xf32, #tpu.memory_space<vmem>>, vector<1x128xf32>
    %61 = vector.broadcast %60 : vector<1x128xf32> to vector<8x128xf32>
    %62 = arith.addf %59, %61 : vector<8x128xf32>
    %cst_31 = arith.constant 0.000000e+00 : f32
    %63 = vector.broadcast %cst_31 : f32 to vector<8x128xf32>
    %64 = arith.maximumf %62, %63 : vector<8x128xf32>
    %65 = arith.truncf %64 : vector<8x128xf32> to vector<8x128xbf16>
    %c0_32 = arith.constant 0 : index
    %c0_33 = arith.constant 0 : index
    %66 = vector.load %arg10[%c0_32, %c0_33] : memref<128x128xbf16, #tpu.memory_space<vmem>>, vector<128x128xbf16>
    %cst_34 = arith.constant dense<0.000000e+00> : vector<8x128xf32>
    %67 = tpu.matmul %65, %66, %cst_34 {dimension_numbers = #tpu.dot_dimension_numbers<[1], [0], [0], [1], [0, 0, 1, 1], [], []>} : vector<8x128xbf16>, vector<128x128xbf16>, vector<8x128xf32> -> vector<8x128xf32>
    %c0_35 = arith.constant 0 : index
    %c0_36 = arith.constant 0 : index
    %68 = vector.load %arg11[%c0_35, %c0_36] : memref<1x128xf32, #tpu.memory_space<vmem>>, vector<1x128xf32>
    %69 = vector.broadcast %68 : vector<1x128xf32> to vector<8x128xf32>
    %70 = arith.addf %67, %69 : vector<8x128xf32>
    %cst_37 = arith.constant 0.000000e+00 : f32
    %71 = vector.broadcast %cst_37 : f32 to vector<8x128xf32>
    %72 = arith.maximumf %70, %71 : vector<8x128xf32>
    %73 = arith.truncf %72 : vector<8x128xf32> to vector<8x128xbf16>
    %c0_38 = arith.constant 0 : index
    %c0_39 = arith.constant 0 : index
    %74 = vector.load %arg12[%c0_38, %c0_39] : memref<128x64xbf16, #tpu.memory_space<vmem>>, vector<128x64xbf16>
    %cst_40 = arith.constant dense<0.000000e+00> : vector<8x64xf32>
    %75 = tpu.matmul %73, %74, %cst_40 {dimension_numbers = #tpu.dot_dimension_numbers<[1], [0], [0], [1], [0, 0, 1, 1], [], []>} : vector<8x128xbf16>, vector<128x64xbf16>, vector<8x64xf32> -> vector<8x64xf32>
    %c0_41 = arith.constant 0 : index
    %c0_42 = arith.constant 0 : index
    %76 = vector.load %arg13[%c0_41, %c0_42] : memref<1x64xf32, #tpu.memory_space<vmem>>, vector<1x64xf32>
    %77 = vector.broadcast %76 : vector<1x64xf32> to vector<8x64xf32>
    %78 = arith.addf %75, %77 : vector<8x64xf32>
    %c0_43 = arith.constant 0 : index
    %c0_44 = arith.constant 0 : index
    %79 = vector.load %arg14[%c0_43, %c0_44] : memref<8x64xf32, #tpu.memory_space<vmem>>, vector<8x64xf32>
    tpu.vector_store %arg14[%c0_43, %c0_44], %78 {strides = array<i32>} : memref<8x64xf32, #tpu.memory_space<vmem>>, vector<8x64xf32>,
    return
  }
  func.func @transform_0(%arg0: i32) -> (i32, i32) {
    %c0_i32 = arith.constant 0 : i32
    %c0_i32_0 = arith.constant 0 : i32
    return %arg0, %c0_i32 : i32, i32
  }
  func.func @transform_1(%arg0: i32) -> (i32, i32) {
    %c0_i32 = arith.constant 0 : i32
    %c0_i32_0 = arith.constant 0 : i32
    %c0_i32_1 = arith.constant 0 : i32
    return %c0_i32, %c0_i32_0 : i32, i32
  }
  func.func @transform_2(%arg0: i32) -> (i32, i32) {
    %c0_i32 = arith.constant 0 : i32
    %c0_i32_0 = arith.constant 0 : i32
    %c0_i32_1 = arith.constant 0 : i32
    return %c0_i32, %c0_i32_0 : i32, i32
  }
  func.func @transform_3(%arg0: i32) -> (i32, i32) {
    %c0_i32 = arith.constant 0 : i32
    %c0_i32_0 = arith.constant 0 : i32
    %c0_i32_1 = arith.constant 0 : i32
    return %c0_i32, %c0_i32_0 : i32, i32
  }
  func.func @transform_4(%arg0: i32) -> (i32, i32) {
    %c0_i32 = arith.constant 0 : i32
    %c0_i32_0 = arith.constant 0 : i32
    %c0_i32_1 = arith.constant 0 : i32
    return %c0_i32, %c0_i32_0 : i32, i32
  }
  func.func @transform_5(%arg0: i32) -> (i32, i32) {
    %c0_i32 = arith.constant 0 : i32
    %c0_i32_0 = arith.constant 0 : i32
    %c0_i32_1 = arith.constant 0 : i32
    return %c0_i32, %c0_i32_0 : i32, i32
  }
  func.func @transform_6(%arg0: i32) -> (i32, i32) {
    %c0_i32 = arith.constant 0 : i32
    %c0_i32_0 = arith.constant 0 : i32
    %c0_i32_1 = arith.constant 0 : i32
    return %c0_i32, %c0_i32_0 : i32, i32
  }
  func.func @transform_7(%arg0: i32) -> (i32, i32) {
    %c0_i32 = arith.constant 0 : i32
    %c0_i32_0 = arith.constant 0 : i32
    %c0_i32_1 = arith.constant 0 : i32
    return %c0_i32, %c0_i32_0 : i32, i32
  }
  func.func @transform_8(%arg0: i32) -> (i32, i32) {
    %c0_i32 = arith.constant 0 : i32
    %c0_i32_0 = arith.constant 0 : i32
    %c0_i32_1 = arith.constant 0 : i32
    return %c0_i32, %c0_i32_0 : i32, i32
  }
  func.func @transform_9(%arg0: i32) -> (i32, i32) {
    %c0_i32 = arith.constant 0 : i32
    %c0_i32_0 = arith.constant 0 : i32
    %c0_i32_1 = arith.constant 0 : i32
    return %c0_i32, %c0_i32_0 : i32, i32
  }
  func.func @transform_10(%arg0: i32) -> (i32, i32) {
    %c0_i32 = arith.constant 0 : i32
    %c0_i32_0 = arith.constant 0 : i32
    %c0_i32_1 = arith.constant 0 : i32
    return %c0_i32, %c0_i32_0 : i32, i32
  }
  func.func @transform_11(%arg0: i32) -> (i32, i32) {
    %c0_i32 = arith.constant 0 : i32
    %c0_i32_0 = arith.constant 0 : i32
    %c0_i32_1 = arith.constant 0 : i32
    return %c0_i32, %c0_i32_0 : i32, i32
  }
  func.func @transform_12(%arg0: i32) -> (i32, i32) {
    %c0_i32 = arith.constant 0 : i32
    %c0_i32_0 = arith.constant 0 : i32
    %c0_i32_1 = arith.constant 0 : i32
    return %c0_i32, %c0_i32_0 : i32, i32
  }
  func.func @transform_13(%arg0: i32) -> (i32, i32) {
    %c0_i32 = arith.constant 0 : i32
    %c0_i32_0 = arith.constant 0 : i32
    return %arg0, %c0_i32 : i32, i32
  }
}

</mosaic_0001>

<llo_original>
// kernel: tpu_custom_call.1
$region0: #{tpu_custom_call.1}
  #allocation0 [shape = 'u32[]', space=smem, size = 0x4, offset = 0x4, fixed_abs, tag = 'smem constant byte address 0x4 - core index']
  #allocation1 [shape = 'u32[144,128]{1,0:T(1,128)}', space=vmem, size = 0x12000, scoped, tag = 'internal scratch']
  %s0 = inlined_call_operand.vmem [shape: bf16[8,128], index: 0, kind: input, shape index: {}]
  %s1 = inlined_call_operand.hbm [shape: bf16[128,256], index: 1, kind: input, shape index: {}]
  %s2 = inlined_call_operand.vmem [shape: f32[1,256], index: 2, kind: input, shape index: {}]
  %s3 = inlined_call_operand.hbm [shape: bf16[384,256], index: 3, kind: input, shape index: {}]
  %s4 = inlined_call_operand.vmem [shape: f32[1,256], index: 4, kind: input, shape index: {}]
  %s5 = inlined_call_operand.hbm [shape: bf16[384,256], index: 5, kind: input, shape index: {}]
  %s6 = inlined_call_operand.vmem [shape: f32[1,256], index: 6, kind: input, shape index: {}]
  %s7 = inlined_call_operand.hbm [shape: bf16[256,128], index: 7, kind: input, shape index: {}]
  %s8 = inlined_call_operand.vmem [shape: f32[1,128], index: 8, kind: input, shape index: {}]
  %s9 = inlined_call_operand.vmem [shape: bf16[128,128], index: 9, kind: input, shape index: {}]
  %s10 = inlined_call_operand.vmem [shape: f32[1,128], index: 10, kind: input, shape index: {}]
  %s11 = inlined_call_operand.vmem [shape: bf16[128,64], index: 11, kind: input, shape index: {}]
  %s12 = inlined_call_operand.vmem [shape: f32[1,64], index: 12, kind: input, shape index: {}]
  %s13 = inlined_call_operand.hbm [shape: f32[8,64], index: 13, kind: output, shape index: {}]
  %s14 = sld [smem:[#allocation0]]
  $region78: #{tpu_custom_call.1} parent=0
    _
  %s16 = ssub.s32 1, %s14
  %s17 = scalar_select 0, %s16, %s14
  $region1: #{tpu_custom_call.1} parent=0
    #allocation2 [shape = 'u8[65536]{0}', space=vmem, size = 0x10000, scoped, tag = 'input window, operand 1, single buffered']
    #allocation3 [shape = 's32[1]{0}', space=sflag, size = 0x4, scoped, tag = 'scoped memory for tpu_custom_call.1']
    #allocation4 [shape = 's32[1]{0}', space=sflag, size = 0x4, scoped, tag = 'scoped memory for tpu_custom_call.1']
    #allocation5 [shape = 'u8[196608]{0}', space=vmem, size = 0x30000, scoped, tag = 'input window, operand 3, single buffered']
    #allocation6 [shape = 's32[1]{0}', space=sflag, size = 0x4, scoped, tag = 'scoped memory for tpu_custom_call.1']
    #allocation7 [shape = 'u8[196608]{0}', space=vmem, size = 0x30000, scoped, tag = 'input window, operand 5, single buffered']
    #allocation8 [shape = 'u8[65536]{0}', space=vmem, size = 0x10000, scoped, tag = 'input window, operand 7, single buffered']
    #allocation9 [shape = 's32[1]{0}', space=sflag, size = 0x4, scoped, tag = 'scoped memory for tpu_custom_call.1']
    #allocation10 [shape = 'u8[4096]{0}', space=vmem, size = 0x1000, scoped, tag = 'output window, operand 0, single buffered']
    %18 = vsyncpa [#allocation3], 0
    %19 = vsyncpa [#allocation6], 0
    %20 = vsyncpa [#allocation9], 0
    %21 = vsyncpa [#allocation4], 0
    // Predicated region
    $region2: #{tpu_custom_call.1} parent=1 // pred_check
      _
    $region3: #{tpu_custom_call.1} parent=1 // pred_check_branch
      %23 = sbr.rel (0) target = $region5
    $region4: #{tpu_custom_call.1} parent=1 // pred_region
      _
    $region5: #{tpu_custom_call.1} parent=1 // pred_fallthru
      _
    // Predicated region
    $region6: #{tpu_custom_call.1} parent=1 // pred_check
      _
    $region7: #{tpu_custom_call.1} parent=1 // pred_check_branch
      %25 = sbr.rel (0) target = $region9
    $region8: #{tpu_custom_call.1} parent=1 // pred_region
      %s27 = ssub.s32 2048, 2048
      %28 = vsyncadd [#allocation3], %s27
      %s29 = sshll.u32 [#allocation2], 4
      %s30 = int_to_ptr.vmem [resolvable:$true] %s29
      %35 = dma.hbm_to_vmem [thread:$0]  %s1, 2048, %s30, [#allocation3], 128, 128, 8
    $region9: #{tpu_custom_call.1} parent=1 // pred_fallthru
      _
    // Predicated region
    $region10: #{tpu_custom_call.1} parent=1 // pred_check
      _
    $region11: #{tpu_custom_call.1} parent=1 // pred_check_branch
      %37 = sbr.rel (0) target = $region13
    $region12: #{tpu_custom_call.1} parent=1 // pred_region
      _
    $region13: #{tpu_custom_call.1} parent=1 // pred_fallthru
      _
    // Predicated region
    $region14: #{tpu_custom_call.1} parent=1 // pred_check
      _
    $region15: #{tpu_custom_call.1} parent=1 // pred_check_branch
      %39 = sbr.rel (0) target = $region17
    $region16: #{tpu_custom_call.1} parent=1 // pred_region
      %s41 = ssub.s32 6144, 6144
      %42 = vsyncadd [#allocation6], %s41
      %s43 = sshll.u32 [#allocation5], 4
      %s44 = int_to_ptr.vmem [resolvable:$true] %s43
      %49 = dma.hbm_to_vmem [thread:$0]  %s3, 6144, %s44, [#allocation6], 128, 128, 8
    $region17: #{tpu_custom_call.1} parent=1 // pred_fallthru
      _
    // Predicated region
    $region18: #{tpu_custom_call.1} parent=1 // pred_check
      _
    $region19: #{tpu_custom_call.1} parent=1 // pred_check_branch
      %51 = sbr.rel (0) target = $region21
    $region20: #{tpu_custom_call.1} parent=1 // pred_region
      _
    $region21: #{tpu_custom_call.1} parent=1 // pred_fallthru
      _
    // Predicated region
    $region22: #{tpu_custom_call.1} parent=1 // pred_check
      _
    $region23: #{tpu_custom_call.1} parent=1 // pred_check_branch
      %53 = sbr.rel (0) target = $region25
    $region24: #{tpu_custom_call.1} parent=1 // pred_region
      %s55 = ssub.s32 6144, 6144
      %56 = vsyncadd [#allocation6], %s55
      %s57 = sshll.u32 [#allocation7], 4
      %s58 = int_to_ptr.vmem [resolvable:$true] %s57
      %63 = dma.hbm_to_vmem [thread:$0]  %s5, 6144, %s58, [#allocation6], 128, 128, 8
    $region25: #{tpu_custom_call.1} parent=1 // pred_fallthru
      _
    // Predicated region
    $region26: #{tpu_custom_call.1} parent=1 // pred_check
      _
    $region27: #{tpu_custom_call.1} parent=1 // pred_check_branch
      %65 = sbr.rel (0) target = $region29
    $region28: #{tpu_custom_call.1} parent=1 // pred_region
      _
    $region29: #{tpu_custom_call.1} parent=1 // pred_fallthru
      _
    // Predicated region
    $region30: #{tpu_custom_call.1} parent=1 // pred_check
      _
    $region31: #{tpu_custom_call.1} parent=1 // pred_check_branch
      %67 = sbr.rel (0) target = $region33
    $region32: #{tpu_custom_call.1} parent=1 // pred_region
      %s69 = ssub.s32 2048, 2048
      %70 = vsyncadd [#allocation9], %s69
      %s71 = sshll.u32 [#allocation8], 4
      %s72 = int_to_ptr.vmem [resolvable:$true] %s71
      %77 = dma.hbm_to_vmem [thread:$0]  %s7, 2048, %s72, [#allocation9], 64, 64, 4
    $region33: #{tpu_custom_call.1} parent=1 // pred_fallthru
      _
    // Predicated region
    $region34: #{tpu_custom_call.1} parent=1 // pred_check
      _
    $region35: #{tpu_custom_call.1} parent=1 // pred_check_branch
      %79 = sbr.rel (0) target = $region37
    $region36: #{tpu_custom_call.1} parent=1 // pred_region
      _
    $region37: #{tpu_custom_call.1} parent=1 // pred_fallthru
      _
    // Predicated region
    $region38: #{tpu_custom_call.1} parent=1 // pred_check
      _
    $region39: #{tpu_custom_call.1} parent=1 // pred_check_branch
      %81 = sbr.rel (0) target = $region41
    $region40: #{tpu_custom_call.1} parent=1 // pred_region
      _
    $region41: #{tpu_custom_call.1} parent=1 // pred_fallthru
      _
    // Predicated region
    $region42: #{tpu_custom_call.1} parent=1 // pred_check
      _
    $region43: #{tpu_custom_call.1} parent=1 // pred_check_branch
      %83 = sbr.rel (0) target = $region45
    $region44: #{tpu_custom_call.1} parent=1 // pred_region
      _
    $region45: #{tpu_custom_call.1} parent=1 // pred_fallthru
      _
    // Predicated region
    $region46: #{tpu_custom_call.1} parent=1 // pred_check
      _
    $region47: #{tpu_custom_call.1} parent=1 // pred_check_branch
      %85 = sbr.rel (0) target = $region49
    $region48: #{tpu_custom_call.1} parent=1 // pred_region
      _
    $region49: #{tpu_custom_call.1} parent=1 // pred_fallthru
      _
    // Predicated region
    $region50: #{tpu_custom_call.1} parent=1 // pred_check
      _
    $region51: #{tpu_custom_call.1} parent=1 // pred_check_branch
      %87 = sbr.rel (0) target = $region53
    $region52: #{tpu_custom_call.1} parent=1 // pred_region
      _
    $region53: #{tpu_custom_call.1} parent=1 // pred_fallthru
      _
    // Predicated region
    $region54: #{tpu_custom_call.1} parent=1 // pred_check
      _
    $region55: #{tpu_custom_call.1} parent=1 // pred_check_branch
      %89 = sbr.rel (0) target = $region57
    $region56: #{tpu_custom_call.1} parent=1 // pred_region
      %90 = dma.done [#allocation3], 2048
    $region57: #{tpu_custom_call.1} parent=1 // pred_fallthru
      _
    // Predicated region
    $region58: #{tpu_custom_call.1} parent=1 // pred_check
      _
    $region59: #{tpu_custom_call.1} parent=1 // pred_check_branch
      %92 = sbr.rel (0) target = $region61
    $region60: #{tpu_custom_call.1} parent=1 // pred_region
      %93 = dma.done [#allocation6], 6144
    $region61: #{tpu_custom_call.1} parent=1 // pred_fallthru
      _
    // Predicated region
    $region62: #{tpu_custom_call.1} parent=1 // pred_check
      _
    $region63: #{tpu_custom_call.1} parent=1 // pred_check_branch
      %95 = sbr.rel (0) target = $region65
    $region64: #{tpu_custom_call.1} parent=1 // pred_region
      %96 = dma.done [#allocation6], 6144
    $region65: #{tpu_custom_call.1} parent=1 // pred_fallthru
      _
    // Predicated region
    $region66: #{tpu_custom_call.1} parent=1 // pred_check
      _
    $region67: #{tpu_custom_call.1} parent=1 // pred_check_branch
      %98 = sbr.rel (0) target = $region69
    $region68: #{tpu_custom_call.1} parent=1 // pred_region
      %99 = dma.done [#allocation9], 2048
    $region69: #{tpu_custom_call.1} parent=1 // pred_fallthru
      _
    %v101 = vlaneseq
    %v102 = vshrl.u32 %v101, 7
    %vm103 = vcmp.lt.s32.totalorder %v102, 0
    %v104 = vsub.s32 0, %v102
    %v105 = vsel %vm103, %v104, %v102
    %v106 = vshrl.u32 %v105, 2
    %v107 = vand.u32 %v105, 3
    %v108 = vsub.s32 0, %v107
    %v109 = vsel %vm103, %v108, %v107
    %vm110 = vcmp.ne.s32.totalorder %v109, 0
    %vm111 = vcmp.lt.s32.totalorder %v109, 0
    %vm112 = vmand %vm111, %vm110
    %v113 = vadd.s32 %v109, 4
    %v114 = vsel %vm112, %v113, %v109
    %vm115 = vcmp.eq.s32.totalorder %v114, 0
    %v116 = vld [vmem:[%s0] sm:$0xf]
    %v117 = vld [vmem:[#allocation2] sm:$0xff]
    %v118 = vld [vmem:[#allocation2 + $0x8] sm:$0xff]
    %v119 = vld [vmem:[#allocation2 + $0x10] sm:$0xff]
    %v120 = vld [vmem:[#allocation2 + $0x18] sm:$0xff]
    %v121 = vld [vmem:[#allocation2 + $0x20] sm:$0xff]
    %v122 = vld [vmem:[#allocation2 + $0x28] sm:$0xff]
    %v123 = vld [vmem:[#allocation2 + $0x30] sm:$0xff]
    %v124 = vld [vmem:[#allocation2 + $0x38] sm:$0xff]
    %v125 = vld [vmem:[#allocation2 + $0x40] sm:$0xff]
    %v126 = vld [vmem:[#allocation2 + $0x48] sm:$0xff]
    %v127 = vld [vmem:[#allocation2 + $0x50] sm:$0xff]
    %v128 = vld [vmem:[#allocation2 + $0x58] sm:$0xff]
    %v129 = vld [vmem:[#allocation2 + $0x60] sm:$0xff]
    %v130 = vld [vmem:[#allocation2 + $0x68] sm:$0xff]
    %v131 = vld [vmem:[#allocation2 + $0x70] sm:$0xff]
    %v132 = vld [vmem:[#allocation2 + $0x78] sm:$0xff]
    %v133 = vld [vmem:[%s2] sm:$0x3]
    %v135 = vlaneseq
    %v136 = vshrl.u32 %v135, 7
    %v137 = vsub.s32 0, %v136
    %v138 = vrot.slane %v133, %v137
    %v139 = vlaneseq
    %v140 = vshrl.u32 %v139, 7
    %v141 = vsub.s32 1, %v140
    %v142 = vrot.slane %v133, %v141
    %v161 = vunpack.c.l.b16 %v117
    %v162 = vunpack.c.h.b16 %v117
    %v163 = vunpack.c.l.b16 %v118
    %v164 = vunpack.c.h.b16 %v118
    %v165 = vunpack.c.l.b16 %v119
    %v166 = vunpack.c.h.b16 %v119
    %v167 = vunpack.c.l.b16 %v120
    %v168 = vunpack.c.h.b16 %v120
    %v169 = vunpack.c.l.b16 %v121
    %v170 = vunpack.c.h.b16 %v121
    %v171 = vunpack.c.l.b16 %v122
    %v172 = vunpack.c.h.b16 %v122
    %v173 = vunpack.c.l.b16 %v123
    %v174 = vunpack.c.h.b16 %v123
    %v175 = vunpack.c.l.b16 %v124
    %v176 = vunpack.c.h.b16 %v124
    %v177 = vunpack.c.l.b16 %v125
    %v178 = vunpack.c.h.b16 %v125
    %v179 = vunpack.c.l.b16 %v126
    %v180 = vunpack.c.h.b16 %v126
    %v181 = vunpack.c.l.b16 %v127
    %v182 = vunpack.c.h.b16 %v127
    %v183 = vunpack.c.l.b16 %v128
    %v184 = vunpack.c.h.b16 %v128
    %v185 = vunpack.c.l.b16 %v129
    %v186 = vunpack.c.h.b16 %v129
    %v187 = vunpack.c.l.b16 %v130
    %v188 = vunpack.c.h.b16 %v130
    %v189 = vunpack.c.l.b16 %v131
    %v190 = vunpack.c.h.b16 %v131
    %v191 = vunpack.c.l.b16 %v132
    %v192 = vunpack.c.h.b16 %v132
    %v193 = vpack.c.b16 %v163, %v161
    %v194 = vpack.c.b16 %v164, %v162
    %v195 = vpack.c.b16 %v167, %v165
    %v196 = vpack.c.b16 %v168, %v166
    %v197 = vpack.c.b16 %v171, %v169
    %v198 = vpack.c.b16 %v172, %v170
    %v199 = vpack.c.b16 %v175, %v173
    %v200 = vpack.c.b16 %v176, %v174
    %v201 = vpack.c.b16 %v179, %v177
    %v202 = vpack.c.b16 %v180, %v178
    %v203 = vpack.c.b16 %v183, %v181
    %v204 = vpack.c.b16 %v184, %v182
    %v205 = vpack.c.b16 %v187, %v185
    %v206 = vpack.c.b16 %v188, %v186
    %v207 = vpack.c.b16 %v191, %v189
    %v208 = vpack.c.b16 %v192, %v190
    %225 = vmatprep.subr.bf16.mxu0 %v194
    %226 = vmatpush1.bf16.msra.mxu0 %v193
    %227 = vmatprep.subr.bf16.mxu0 %v196
    %228 = vmatpush1.bf16.msra.mxu0 %v195
    %229 = vmatprep.subr.bf16.mxu0 %v198
    %230 = vmatpush1.bf16.msra.mxu0 %v197
    %231 = vmatprep.subr.bf16.mxu0 %v200
    %232 = vmatpush1.bf16.msra.mxu0 %v199
    %233 = vmatprep.subr.bf16.mxu0 %v202
    %234 = vmatpush1.bf16.msra.mxu0 %v201
    %235 = vmatprep.subr.bf16.mxu0 %v204
    %236 = vmatpush1.bf16.msra.mxu0 %v203
    %237 = vmatprep.subr.bf16.mxu0 %v206
    %238 = vmatpush1.bf16.msra.mxu0 %v205
    %239 = vmatprep.subr.bf16.mxu0 %v208
    %240 = vmatpush1.bf16.msra.mxu0 %v207
    %241 = vmatprep.subr.bf16.mxu0 0
    %242 = vmatpush1.bf16.msra.mxu0 0
    %243 = vmatprep.subr.bf16.mxu0 0
    %244 = vmatpush1.bf16.msra.mxu0 0
    %245 = vmatprep.subr.bf16.mxu0 0
    %246 = vmatpush1.bf16.msra.mxu0 0
    %247 = vmatprep.subr.bf16.mxu0 0
    %248 = vmatpush1.bf16.msra.mxu0 0
    %249 = vmatprep.subr.bf16.mxu0 0
    %250 = vmatpush1.bf16.msra.mxu0 0
    %251 = vmatprep.subr.bf16.mxu0 0
    %252 = vmatpush1.bf16.msra.mxu0 0
    %253 = vmatprep.subr.bf16.mxu0 0
    %254 = vmatpush1.bf16.msra.mxu0 0
    %255 = vmatprep.subr.bf16.mxu0 0
    %256 = vmatpush1.bf16.msra.mxu0 0
    %257 = vmatprep.mubr.bf16.mxu0 0
    %258 = vmatmul.mubr.bf16.gmra.mrb[0].mxu0 %v116
    %v259 = vpop.f32.mrb[0].mxu0
    %v260 = vadd.f32 %v138, %v259
    %v261 = vpop.f32.mrb[0].mxu0
    %v262 = vadd.f32 %v142, %v261
    %v263 = vpop.f32.mrb[0].mxu0
    %v264 = vpop.f32.mrb[0].mxu0
    %265 = vdwg.mxu0
    %v266 = vmax.f32 %v260, 0.0
    %v267 = vmax.f32 %v262, 0.0
    %v268 = vpack.c.bf16 %v266, %v266
    %v269 = vpack.c.bf16 %v267, %v267
    %v271 = vshrl.u32 %v269, 16
    %v273 = vrot.slane %v271, 7
    %v274 = vshll.u32 %v269, 16
    %v276 = vor.u32 %v273, %v274
    %vm278 = vcmask 1040384
    %vm279 = vsmask.f32 256
    %vm280 = vmand %vm278, %vm279
    %v281 = vsel %vm280, 0, %v276
    %vm282 = vmpackc.low %vm115, %vm115
    %v283 = vsel %vm282, 0, %v281
    %v284 = vld [vmem:[#allocation5] sm:$0xff]
    %v285 = vld [vmem:[#allocation5 + $0x8] sm:$0xff]
    %v286 = vld [vmem:[#allocation5 + $0x10] sm:$0xff]
    %v287 = vld [vmem:[#allocation5 + $0x18] sm:$0xff]
    %v288 = vld [vmem:[#allocation5 + $0x20] sm:$0xff]
    %v289 = vld [vmem:[#allocation5 + $0x28] sm:$0xff]
    %v290 = vld [vmem:[#allocation5 + $0x30] sm:$0xff]
    %v291 = vld [vmem:[#allocation5 + $0x38] sm:$0xff]
    %v292 = vld [vmem:[#allocation5 + $0x40] sm:$0xff]
    %v293 = vld [vmem:[#allocation5 + $0x48] sm:$0xff]
    %v294 = vld [vmem:[#allocation5 + $0x50] sm:$0xff]
    %v295 = vld [vmem:[#allocation5 + $0x58] sm:$0xff]
    %v296 = vld [vmem:[#allocation5 + $0x60] sm:$0xff]
    %v297 = vld [vmem:[#allocation5 + $0x68] sm:$0xff]
    %v298 = vld [vmem:[#allocation5 + $0x70] sm:$0xff]
    %v299 = vld [vmem:[#allocation5 + $0x78] sm:$0xff]
    %v300 = vld [vmem:[#allocation5 + $0x80] sm:$0xff]
    %v301 = vld [vmem:[#allocation5 + $0x88] sm:$0xff]
    %v302 = vld [vmem:[#allocation5 + $0x90] sm:$0xff]
    %v303 = vld [vmem:[#allocation5 + $0x98] sm:$0xff]
    %v304 = vld [vmem:[#allocation5 + $0xa0] sm:$0xff]
    %v305 = vld [vmem:[#allocation5 + $0xa8] sm:$0xff]
    %v306 = vld [vmem:[#allocation5 + $0xb0] sm:$0xff]
    %v307 = vld [vmem:[#allocation5 + $0xb8] sm:$0xff]
    %v308 = vld [vmem:[#allocation5 + $0xc0] sm:$0xff]
    %v309 = vld [vmem:[#allocation5 + $0xc8] sm:$0xff]
    %v310 = vld [vmem:[#allocation5 + $0xd0] sm:$0xff]
    %v311 = vld [vmem:[#allocation5 + $0xd8] sm:$0xff]
    %v312 = vld [vmem:[#allocation5 + $0xe0] sm:$0xff]
    %v313 = vld [vmem:[#allocation5 + $0xe8] sm:$0xff]
    %v314 = vld [vmem:[#allocation5 + $0xf0] sm:$0xff]
    %v315 = vld [vmem:[#allocation5 + $0xf8] sm:$0xff]
    %v316 = vld [vmem:[#allocation5 + $0x100] sm:$0xff]
    %v317 = vld [vmem:[#allocation5 + $0x108] sm:$0xff]
    %v318 = vld [vmem:[#allocation5 + $0x110] sm:$0xff]
    %v319 = vld [vmem:[#allocation5 + $0x118] sm:$0xff]
    %v320 = vld [vmem:[#allocation5 + $0x120] sm:$0xff]
    %v321 = vld [vmem:[#allocation5 + $0x128] sm:$0xff]
    %v322 = vld [vmem:[#allocation5 + $0x130] sm:$0xff]
    %v323 = vld [vmem:[#allocation5 + $0x138] sm:$0xff]
    %v324 = vld [vmem:[#allocation5 + $0x140] sm:$0xff]
    %v325 = vld [vmem:[#allocation5 + $0x148] sm:$0xff]
    %v326 = vld [vmem:[#allocation5 + $0x150] sm:$0xff]
    %v327 = vld [vmem:[#allocation5 + $0x158] sm:$0xff]
    %v328 = vld [vmem:[#allocation5 + $0x160] sm:$0xff]
    %v329 = vld [vmem:[#allocation5 + $0x168] sm:$0xff]
    %v330 = vld [vmem:[#allocation5 + $0x170] sm:$0xff]
    %v331 = vld [vmem:[#allocation5 + $0x178] sm:$0xff]
    %v332 = vld [vmem:[%s4] sm:$0x3]
    %v334 = vlaneseq
    %v335 = vshrl.u32 %v334, 7
    %v336 = vsub.s32 0, %v335
    %v337 = vrot.slane %v332, %v336
    %v338 = vlaneseq
    %v339 = vshrl.u32 %v338, 7
    %v340 = vsub.s32 1, %v339
    %v341 = vrot.slane %v332, %v340
    %v392 = vunpack.c.l.b16 %v284
    %v393 = vunpack.c.h.b16 %v284
    %v394 = vunpack.c.l.b16 %v285
    %v395 = vunpack.c.h.b16 %v285
    %v396 = vunpack.c.l.b16 %v286
    %v397 = vunpack.c.h.b16 %v286
    %v398 = vunpack.c.l.b16 %v287
    %v399 = vunpack.c.h.b16 %v287
    %v400 = vunpack.c.l.b16 %v288
    %v401 = vunpack.c.h.b16 %v288
    %v402 = vunpack.c.l.b16 %v289
    %v403 = vunpack.c.h.b16 %v289
    %v404 = vunpack.c.l.b16 %v290
    %v405 = vunpack.c.h.b16 %v290
    %v406 = vunpack.c.l.b16 %v291
    %v407 = vunpack.c.h.b16 %v291
    %v408 = vunpack.c.l.b16 %v292
    %v409 = vunpack.c.h.b16 %v292
    %v410 = vunpack.c.l.b16 %v293
    %v411 = vunpack.c.h.b16 %v293
    %v412 = vunpack.c.l.b16 %v294
    %v413 = vunpack.c.h.b16 %v294
    %v414 = vunpack.c.l.b16 %v295
    %v415 = vunpack.c.h.b16 %v295
    %v416 = vunpack.c.l.b16 %v296
    %v417 = vunpack.c.h.b16 %v296
    %v418 = vunpack.c.l.b16 %v297
    %v419 = vunpack.c.h.b16 %v297
    %v420 = vunpack.c.l.b16 %v298
    %v421 = vunpack.c.h.b16 %v298
    %v422 = vunpack.c.l.b16 %v299
    %v423 = vunpack.c.h.b16 %v299
    %v424 = vunpack.c.l.b16 %v300
    %v425 = vunpack.c.h.b16 %v300
    %v426 = vunpack.c.l.b16 %v301
    %v427 = vunpack.c.h.b16 %v301
    %v428 = vunpack.c.l.b16 %v302
    %v429 = vunpack.c.h.b16 %v302
    %v430 = vunpack.c.l.b16 %v303
    %v431 = vunpack.c.h.b16 %v303
    %v432 = vunpack.c.l.b16 %v304
    %v433 = vunpack.c.h.b16 %v304
    %v434 = vunpack.c.l.b16 %v305
    %v435 = vunpack.c.h.b16 %v305
    %v436 = vunpack.c.l.b16 %v306
    %v437 = vunpack.c.h.b16 %v306
    %v438 = vunpack.c.l.b16 %v307
    %v439 = vunpack.c.h.b16 %v307
    %v440 = vunpack.c.l.b16 %v308
    %v441 = vunpack.c.h.b16 %v308
    %v442 = vunpack.c.l.b16 %v309
    %v443 = vunpack.c.h.b16 %v309
    %v444 = vunpack.c.l.b16 %v310
    %v445 = vunpack.c.h.b16 %v310
    %v446 = vunpack.c.l.b16 %v311
    %v447 = vunpack.c.h.b16 %v311
    %v448 = vunpack.c.l.b16 %v312
    %v449 = vunpack.c.h.b16 %v312
    %v450 = vunpack.c.l.b16 %v313
    %v451 = vunpack.c.h.b16 %v313
    %v452 = vunpack.c.l.b16 %v314
    %v453 = vunpack.c.h.b16 %v314
    %v454 = vunpack.c.l.b16 %v315
    %v455 = vunpack.c.h.b16 %v315
    %v456 = vunpack.c.l.b16 %v316
    %v457 = vunpack.c.h.b16 %v316
    %v458 = vunpack.c.l.b16 %v317
    %v459 = vunpack.c.h.b16 %v317
    %v460 = vunpack.c.l.b16 %v318
    %v461 = vunpack.c.h.b16 %v318
    %v462 = vunpack.c.l.b16 %v319
    %v463 = vunpack.c.h.b16 %v319
    %v464 = vunpack.c.l.b16 %v320
    %v465 = vunpack.c.h.b16 %v320
    %v466 = vunpack.c.l.b16 %v321
    %v467 = vunpack.c.h.b16 %v321
    %v468 = vunpack.c.l.b16 %v322
    %v469 = vunpack.c.h.b16 %v322
    %v470 = vunpack.c.l.b16 %v323
    %v471 = vunpack.c.h.b16 %v323
    %v472 = vunpack.c.l.b16 %v324
    %v473 = vunpack.c.h.b16 %v324
    %v474 = vunpack.c.l.b16 %v325
    %v475 = vunpack.c.h.b16 %v325
    %v476 = vunpack.c.l.b16 %v326
    %v477 = vunpack.c.h.b16 %v326
    %v478 = vunpack.c.l.b16 %v327
    %v479 = vunpack.c.h.b16 %v327
    %v480 = vunpack.c.l.b16 %v328
    %v481 = vunpack.c.h.b16 %v328
    %v482 = vunpack.c.l.b16 %v329
    %v483 = vunpack.c.h.b16 %v329
    %v484 = vunpack.c.l.b16 %v330
    %v485 = vunpack.c.h.b16 %v330
    %v486 = vunpack.c.l.b16 %v331
    %v487 = vunpack.c.h.b16 %v331
    %v488 = vpack.c.b16 %v394, %v392
    %v489 = vpack.c.b16 %v395, %v393
    %v490 = vpack.c.b16 %v398, %v396
    %v491 = vpack.c.b16 %v399, %v397
    %v492 = vpack.c.b16 %v402, %v400
    %v493 = vpack.c.b16 %v403, %v401
    %v494 = vpack.c.b16 %v406, %v404
    %v495 = vpack.c.b16 %v407, %v405
    %v496 = vpack.c.b16 %v410, %v408
    %v497 = vpack.c.b16 %v411, %v409
    %v498 = vpack.c.b16 %v414, %v412
    %v499 = vpack.c.b16 %v415, %v413
    %v500 = vpack.c.b16 %v418, %v416
    %v501 = vpack.c.b16 %v419, %v417
    %v502 = vpack.c.b16 %v422, %v420
    %v503 = vpack.c.b16 %v423, %v421
    %v504 = vpack.c.b16 %v426, %v424
    %v505 = vpack.c.b16 %v427, %v425
    %v506 = vpack.c.b16 %v430, %v428
    %v507 = vpack.c.b16 %v431, %v429
    %v508 = vpack.c.b16 %v434, %v432
    %v509 = vpack.c.b16 %v435, %v433
    %v510 = vpack.c.b16 %v438, %v436
    %v511 = vpack.c.b16 %v439, %v437
    %v512 = vpack.c.b16 %v442, %v440
    %v513 = vpack.c.b16 %v443, %v441
    %v514 = vpack.c.b16 %v446, %v444
    %v515 = vpack.c.b16 %v447, %v445
    %v516 = vpack.c.b16 %v450, %v448
    %v517 = vpack.c.b16 %v451, %v449
    %v518 = vpack.c.b16 %v454, %v452
    %v519 = vpack.c.b16 %v455, %v453
    %v520 = vpack.c.b16 %v458, %v456
    %v521 = vpack.c.b16 %v459, %v457
    %v522 = vpack.c.b16 %v462, %v460
    %v523 = vpack.c.b16 %v463, %v461
    %v524 = vpack.c.b16 %v466, %v464
    %v525 = vpack.c.b16 %v467, %v465
    %v526 = vpack.c.b16 %v470, %v468
    %v527 = vpack.c.b16 %v471, %v469
    %v528 = vpack.c.b16 %v474, %v472
    %v529 = vpack.c.b16 %v475, %v473
    %v530 = vpack.c.b16 %v478, %v476
    %v531 = vpack.c.b16 %v479, %v477
    %v532 = vpack.c.b16 %v482, %v480
    %v533 = vpack.c.b16 %v483, %v481
    %v534 = vpack.c.b16 %v486, %v484
    %v535 = vpack.c.b16 %v487, %v485
    %584 = vmatprep.subr.bf16.mxu0 %v489
    %585 = vmatpush1.bf16.msra.mxu0 %v488
    %586 = vmatprep.subr.bf16.mxu0 %v491
    %587 = vmatpush1.bf16.msra.mxu0 %v490
    %588 = vmatprep.subr.bf16.mxu0 %v493
    %589 = vmatpush1.bf16.msra.mxu0 %v492
    %590 = vmatprep.subr.bf16.mxu0 %v495
    %591 = vmatpush1.bf16.msra.mxu0 %v494
    %592 = vmatprep.subr.bf16.mxu0 %v497
    %593 = vmatpush1.bf16.msra.mxu0 %v496
    %594 = vmatprep.subr.bf16.mxu0 %v499
    %595 = vmatpush1.bf16.msra.mxu0 %v498
    %596 = vmatprep.subr.bf16.mxu0 %v501
    %597 = vmatpush1.bf16.msra.mxu0 %v500
    %598 = vmatprep.subr.bf16.mxu0 %v503
    %599 = vmatpush1.bf16.msra.mxu0 %v502
    %600 = vmatprep.subr.bf16.mxu0 %v505
    %601 = vmatpush1.bf16.msra.mxu0 %v504
    %602 = vmatprep.subr.bf16.mxu0 %v507
    %603 = vmatpush1.bf16.msra.mxu0 %v506
    %604 = vmatprep.subr.bf16.mxu0 %v509
    %605 = vmatpush1.bf16.msra.mxu0 %v508
    %606 = vmatprep.subr.bf16.mxu0 %v511
    %607 = vmatpush1.bf16.msra.mxu0 %v510
    %608 = vmatprep.subr.bf16.mxu0 %v513
    %609 = vmatpush1.bf16.msra.mxu0 %v512
    %610 = vmatprep.subr.bf16.mxu0 %v515
    %611 = vmatpush1.bf16.msra.mxu0 %v514
    %612 = vmatprep.subr.bf16.mxu0 %v517
    %613 = vmatpush1.bf16.msra.mxu0 %v516
    %614 = vmatprep.subr.bf16.mxu0 %v519
    %615 = vmatpush1.bf16.msra.mxu0 %v518
    %616 = vmatprep.mubr.bf16.mxu0 %v269
    %617 = vmatmul.mubr.bf16.gmra.mrb[0].mxu0 %v268
    %v618 = vpop.f32.mrb[0].mxu0
    %v619 = vadd.f32 %v337, %v618
    %v620 = vpop.f32.mrb[0].mxu0
    %v621 = vadd.f32 %v341, %v620
    %v622 = vpop.f32.mrb[0].mxu0
    %v623 = vpop.f32.mrb[0].mxu0
    %624 = vdwg.mxu0
    %625 = vmatprep.subr.bf16.mxu0 %v521
    %626 = vmatpush1.bf16.msra.mxu0 %v520
    %627 = vmatprep.subr.bf16.mxu0 %v523
    %628 = vmatpush1.bf16.msra.mxu0 %v522
    %629 = vmatprep.subr.bf16.mxu0 %v525
    %630 = vmatpush1.bf16.msra.mxu0 %v524
    %631 = vmatprep.subr.bf16.mxu0 %v527
    %632 = vmatpush1.bf16.msra.mxu0 %v526
    %633 = vmatprep.subr.bf16.mxu0 %v529
    %634 = vmatpush1.bf16.msra.mxu0 %v528
    %635 = vmatprep.subr.bf16.mxu0 %v531
    %636 = vmatpush1.bf16.msra.mxu0 %v530
    %637 = vmatprep.subr.bf16.mxu0 %v533
    %638 = vmatpush1.bf16.msra.mxu0 %v532
    %639 = vmatprep.subr.bf16.mxu0 %v535
    %640 = vmatpush1.bf16.msra.mxu0 %v534
    %641 = vmatprep.subr.bf16.mxu0 0
    %642 = vmatpush1.bf16.msra.mxu0 0
    %643 = vmatprep.subr.bf16.mxu0 0
    %644 = vmatpush1.bf16.msra.mxu0 0
    %645 = vmatprep.subr.bf16.mxu0 0
    %646 = vmatpush1.bf16.msra.mxu0 0
    %647 = vmatprep.subr.bf16.mxu0 0
    %648 = vmatpush1.bf16.msra.mxu0 0
    %649 = vmatprep.subr.bf16.mxu0 0
    %650 = vmatpush1.bf16.msra.mxu0 0
    %651 = vmatprep.subr.bf16.mxu0 0
    %652 = vmatpush1.bf16.msra.mxu0 0
    %653 = vmatprep.subr.bf16.mxu0 0
    %654 = vmatpush1.bf16.msra.mxu0 0
    %655 = vmatprep.subr.bf16.mxu0 0
    %656 = vmatpush1.bf16.msra.mxu0 0
    %657 = vmatprep.mubr.bf16.mxu0 0
    %658 = vmatmul.mubr.bf16.gmra.mrb[0].mxu0 %v283
    %v659 = vpop.f32.mrb[0].mxu0
    %v660 = vadd.f32 %v619, %v659
    %v661 = vpop.f32.mrb[0].mxu0
    %v662 = vadd.f32 %v621, %v661
    %v663 = vpop.f32.mrb[0].mxu0
    %v664 = vpop.f32.mrb[0].mxu0
    %665 = vdwg.mxu0
    %v666 = vmax.f32 %v660, 0.0
    %v667 = vmax.f32 %v662, 0.0
    %v668 = vpack.c.bf16 %v666, %v666
    %v669 = vpack.c.bf16 %v667, %v667
    %v671 = vshrl.u32 %v669, 16
    %v673 = vrot.slane %v671, 7
    %v674 = vshll.u32 %v669, 16
    %v676 = vor.u32 %v673, %v674
    %v678 = vsel %vm280, 0, %v676
    %v679 = vsel %vm282, 0, %v678
    %v680 = vld [vmem:[#allocation7] sm:$0xff]
    %v681 = vld [vmem:[#allocation7 + $0x8] sm:$0xff]
    %v682 = vld [vmem:[#allocation7 + $0x10] sm:$0xff]
    %v683 = vld [vmem:[#allocation7 + $0x18] sm:$0xff]
    %v684 = vld [vmem:[#allocation7 + $0x20] sm:$0xff]
    %v685 = vld [vmem:[#allocation7 + $0x28] sm:$0xff]
    %v686 = vld [vmem:[#allocation7 + $0x30] sm:$0xff]
    %v687 = vld [vmem:[#allocation7 + $0x38] sm:$0xff]
    %v688 = vld [vmem:[#allocation7 + $0x40] sm:$0xff]
    %v689 = vld [vmem:[#allocation7 + $0x48] sm:$0xff]
    %v690 = vld [vmem:[#allocation7 + $0x50] sm:$0xff]
    %v691 = vld [vmem:[#allocation7 + $0x58] sm:$0xff]
    %v692 = vld [vmem:[#allocation7 + $0x60] sm:$0xff]
    %v693 = vld [vmem:[#allocation7 + $0x68] sm:$0xff]
    %v694 = vld [vmem:[#allocation7 + $0x70] sm:$0xff]
    %v695 = vld [vmem:[#allocation7 + $0x78] sm:$0xff]
    %v696 = vld [vmem:[#allocation7 + $0x80] sm:$0xff]
    %v697 = vld [vmem:[#allocation7 + $0x88] sm:$0xff]
    %v698 = vld [vmem:[#allocation7 + $0x90] sm:$0xff]
    %v699 = vld [vmem:[#allocation7 + $0x98] sm:$0xff]
    %v700 = vld [vmem:[#allocation7 + $0xa0] sm:$0xff]
    %v701 = vld [vmem:[#allocation7 + $0xa8] sm:$0xff]
    %v702 = vld [vmem:[#allocation7 + $0xb0] sm:$0xff]
    %v703 = vld [vmem:[#allocation7 + $0xb8] sm:$0xff]
    %v704 = vld [vmem:[#allocation7 + $0xc0] sm:$0xff]
    %v705 = vld [vmem:[#allocation7 + $0xc8] sm:$0xff]
    %v706 = vld [vmem:[#allocation7 + $0xd0] sm:$0xff]
    %v707 = vld [vmem:[#allocation7 + $0xd8] sm:$0xff]
    %v708 = vld [vmem:[#allocation7 + $0xe0] sm:$0xff]
    %v709 = vld [vmem:[#allocation7 + $0xe8] sm:$0xff]
    %v710 = vld [vmem:[#allocation7 + $0xf0] sm:$0xff]
    %v711 = vld [vmem:[#allocation7 + $0xf8] sm:$0xff]
    %v712 = vld [vmem:[#allocation7 + $0x100] sm:$0xff]
    %v713 = vld [vmem:[#allocation7 + $0x108] sm:$0xff]
    %v714 = vld [vmem:[#allocation7 + $0x110] sm:$0xff]
    %v715 = vld [vmem:[#allocation7 + $0x118] sm:$0xff]
    %v716 = vld [vmem:[#allocation7 + $0x120] sm:$0xff]
    %v717 = vld [vmem:[#allocation7 + $0x128] sm:$0xff]
    %v718 = vld [vmem:[#allocation7 + $0x130] sm:$0xff]
    %v719 = vld [vmem:[#allocation7 + $0x138] sm:$0xff]
    %v720 = vld [vmem:[#allocation7 + $0x140] sm:$0xff]
    %v721 = vld [vmem:[#allocation7 + $0x148] sm:$0xff]
    %v722 = vld [vmem:[#allocation7 + $0x150] sm:$0xff]
    %v723 = vld [vmem:[#allocation7 + $0x158] sm:$0xff]
    %v724 = vld [vmem:[#allocation7 + $0x160] sm:$0xff]
    %v725 = vld [vmem:[#allocation7 + $0x168] sm:$0xff]
    %v726 = vld [vmem:[#allocation7 + $0x170] sm:$0xff]
    %v727 = vld [vmem:[#allocation7 + $0x178] sm:$0xff]
    %v728 = vld [vmem:[%s6] sm:$0x3]
    %v730 = vlaneseq
    %v731 = vshrl.u32 %v730, 7
    %v732 = vsub.s32 0, %v731
    %v733 = vrot.slane %v728, %v732
    %v734 = vlaneseq
    %v735 = vshrl.u32 %v734, 7
    %v736 = vsub.s32 1, %v735
    %v737 = vrot.slane %v728, %v736
    %v788 = vunpack.c.l.b16 %v680
    %v789 = vunpack.c.h.b16 %v680
    %v790 = vunpack.c.l.b16 %v681
    %v791 = vunpack.c.h.b16 %v681
    %v792 = vunpack.c.l.b16 %v682
    %v793 = vunpack.c.h.b16 %v682
    %v794 = vunpack.c.l.b16 %v683
    %v795 = vunpack.c.h.b16 %v683
    %v796 = vunpack.c.l.b16 %v684
    %v797 = vunpack.c.h.b16 %v684
    %v798 = vunpack.c.l.b16 %v685
    %v799 = vunpack.c.h.b16 %v685
    %v800 = vunpack.c.l.b16 %v686
    %v801 = vunpack.c.h.b16 %v686
    %v802 = vunpack.c.l.b16 %v687
    %v803 = vunpack.c.h.b16 %v687
    %v804 = vunpack.c.l.b16 %v688
    %v805 = vunpack.c.h.b16 %v688
    %v806 = vunpack.c.l.b16 %v689
    %v807 = vunpack.c.h.b16 %v689
    %v808 = vunpack.c.l.b16 %v690
    %v809 = vunpack.c.h.b16 %v690
    %v810 = vunpack.c.l.b16 %v691
    %v811 = vunpack.c.h.b16 %v691
    %v812 = vunpack.c.l.b16 %v692
    %v813 = vunpack.c.h.b16 %v692
    %v814 = vunpack.c.l.b16 %v693
    %v815 = vunpack.c.h.b16 %v693
    %v816 = vunpack.c.l.b16 %v694
    %v817 = vunpack.c.h.b16 %v694
    %v818 = vunpack.c.l.b16 %v695
    %v819 = vunpack.c.h.b16 %v695
    %v820 = vunpack.c.l.b16 %v696
    %v821 = vunpack.c.h.b16 %v696
    %v822 = vunpack.c.l.b16 %v697
    %v823 = vunpack.c.h.b16 %v697
    %v824 = vunpack.c.l.b16 %v698
    %v825 = vunpack.c.h.b16 %v698
    %v826 = vunpack.c.l.b16 %v699
    %v827 = vunpack.c.h.b16 %v699
    %v828 = vunpack.c.l.b16 %v700
    %v829 = vunpack.c.h.b16 %v700
    %v830 = vunpack.c.l.b16 %v701
    %v831 = vunpack.c.h.b16 %v701
    %v832 = vunpack.c.l.b16 %v702
    %v833 = vunpack.c.h.b16 %v702
    %v834 = vunpack.c.l.b16 %v703
    %v835 = vunpack.c.h.b16 %v703
    %v836 = vunpack.c.l.b16 %v704
    %v837 = vunpack.c.h.b16 %v704
    %v838 = vunpack.c.l.b16 %v705
    %v839 = vunpack.c.h.b16 %v705
    %v840 = vunpack.c.l.b16 %v706
    %v841 = vunpack.c.h.b16 %v706
    %v842 = vunpack.c.l.b16 %v707
    %v843 = vunpack.c.h.b16 %v707
    %v844 = vunpack.c.l.b16 %v708
    %v845 = vunpack.c.h.b16 %v708
    %v846 = vunpack.c.l.b16 %v709
    %v847 = vunpack.c.h.b16 %v709
    %v848 = vunpack.c.l.b16 %v710
    %v849 = vunpack.c.h.b16 %v710
    %v850 = vunpack.c.l.b16 %v711
    %v851 = vunpack.c.h.b16 %v711
    %v852 = vunpack.c.l.b16 %v712
    %v853 = vunpack.c.h.b16 %v712
    %v854 = vunpack.c.l.b16 %v713
    %v855 = vunpack.c.h.b16 %v713
    %v856 = vunpack.c.l.b16 %v714
    %v857 = vunpack.c.h.b16 %v714
    %v858 = vunpack.c.l.b16 %v715
    %v859 = vunpack.c.h.b16 %v715
    %v860 = vunpack.c.l.b16 %v716
    %v861 = vunpack.c.h.b16 %v716
    %v862 = vunpack.c.l.b16 %v717
    %v863 = vunpack.c.h.b16 %v717
    %v864 = vunpack.c.l.b16 %v718
    %v865 = vunpack.c.h.b16 %v718
    %v866 = vunpack.c.l.b16 %v719
    %v867 = vunpack.c.h.b16 %v719
    %v868 = vunpack.c.l.b16 %v720
    %v869 = vunpack.c.h.b16 %v720
    %v870 = vunpack.c.l.b16 %v721
    %v871 = vunpack.c.h.b16 %v721
    %v872 = vunpack.c.l.b16 %v722
    %v873 = vunpack.c.h.b16 %v722
    %v874 = vunpack.c.l.b16 %v723
    %v875 = vunpack.c.h.b16 %v723
    %v876 = vunpack.c.l.b16 %v724
    %v877 = vunpack.c.h.b16 %v724
    %v878 = vunpack.c.l.b16 %v725
    %v879 = vunpack.c.h.b16 %v725
    %v880 = vunpack.c.l.b16 %v726
    %v881 = vunpack.c.h.b16 %v726
    %v882 = vunpack.c.l.b16 %v727
    %v883 = vunpack.c.h.b16 %v727
    %v884 = vpack.c.b16 %v790, %v788
    %v885 = vpack.c.b16 %v791, %v789
    %v886 = vpack.c.b16 %v794, %v792
    %v887 = vpack.c.b16 %v795, %v793
    %v888 = vpack.c.b16 %v798, %v796
    %v889 = vpack.c.b16 %v799, %v797
    %v890 = vpack.c.b16 %v802, %v800
    %v891 = vpack.c.b16 %v803, %v801
    %v892 = vpack.c.b16 %v806, %v804
    %v893 = vpack.c.b16 %v807, %v805
    %v894 = vpack.c.b16 %v810, %v808
    %v895 = vpack.c.b16 %v811, %v809
    %v896 = vpack.c.b16 %v814, %v812
    %v897 = vpack.c.b16 %v815, %v813
    %v898 = vpack.c.b16 %v818, %v816
    %v899 = vpack.c.b16 %v819, %v817
    %v900 = vpack.c.b16 %v822, %v820
    %v901 = vpack.c.b16 %v823, %v821
    %v902 = vpack.c.b16 %v826, %v824
    %v903 = vpack.c.b16 %v827, %v825
    %v904 = vpack.c.b16 %v830, %v828
    %v905 = vpack.c.b16 %v831, %v829
    %v906 = vpack.c.b16 %v834, %v832
    %v907 = vpack.c.b16 %v835, %v833
    %v908 = vpack.c.b16 %v838, %v836
    %v909 = vpack.c.b16 %v839, %v837
    %v910 = vpack.c.b16 %v842, %v840
    %v911 = vpack.c.b16 %v843, %v841
    %v912 = vpack.c.b16 %v846, %v844
    %v913 = vpack.c.b16 %v847, %v845
    %v914 = vpack.c.b16 %v850, %v848
    %v915 = vpack.c.b16 %v851, %v849
    %v916 = vpack.c.b16 %v854, %v852
    %v917 = vpack.c.b16 %v855, %v853
    %v918 = vpack.c.b16 %v858, %v856
    %v919 = vpack.c.b16 %v859, %v857
    %v920 = vpack.c.b16 %v862, %v860
    %v921 = vpack.c.b16 %v863, %v861
    %v922 = vpack.c.b16 %v866, %v864
    %v923 = vpack.c.b16 %v867, %v865
    %v924 = vpack.c.b16 %v870, %v868
    %v925 = vpack.c.b16 %v871, %v869
    %v926 = vpack.c.b16 %v874, %v872
    %v927 = vpack.c.b16 %v875, %v873
    %v928 = vpack.c.b16 %v878, %v876
    %v929 = vpack.c.b16 %v879, %v877
    %v930 = vpack.c.b16 %v882, %v880
    %v931 = vpack.c.b16 %v883, %v881
    %980 = vmatprep.subr.bf16.mxu0 %v885
    %981 = vmatpush1.bf16.msra.mxu0 %v884
    %982 = vmatprep.subr.bf16.mxu0 %v887
    %983 = vmatpush1.bf16.msra.mxu0 %v886
    %984 = vmatprep.subr.bf16.mxu0 %v889
    %985 = vmatpush1.bf16.msra.mxu0 %v888
    %986 = vmatprep.subr.bf16.mxu0 %v891
    %987 = vmatpush1.bf16.msra.mxu0 %v890
    %988 = vmatprep.subr.bf16.mxu0 %v893
    %989 = vmatpush1.bf16.msra.mxu0 %v892
    %990 = vmatprep.subr.bf16.mxu0 %v895
    %991 = vmatpush1.bf16.msra.mxu0 %v894
    %992 = vmatprep.subr.bf16.mxu0 %v897
    %993 = vmatpush1.bf16.msra.mxu0 %v896
    %994 = vmatprep.subr.bf16.mxu0 %v899
    %995 = vmatpush1.bf16.msra.mxu0 %v898
    %996 = vmatprep.subr.bf16.mxu0 %v901
    %997 = vmatpush1.bf16.msra.mxu0 %v900
    %998 = vmatprep.subr.bf16.mxu0 %v903
    %999 = vmatpush1.bf16.msra.mxu0 %v902
    %1000 = vmatprep.subr.bf16.mxu0 %v905
    %1001 = vmatpush1.bf16.msra.mxu0 %v904
    %1002 = vmatprep.subr.bf16.mxu0 %v907
    %1003 = vmatpush1.bf16.msra.mxu0 %v906
    %1004 = vmatprep.subr.bf16.mxu0 %v909
    %1005 = vmatpush1.bf16.msra.mxu0 %v908
    %1006 = vmatprep.subr.bf16.mxu0 %v911
    %1007 = vmatpush1.bf16.msra.mxu0 %v910
    %1008 = vmatprep.subr.bf16.mxu0 %v913
    %1009 = vmatpush1.bf16.msra.mxu0 %v912
    %1010 = vmatprep.subr.bf16.mxu0 %v915
    %1011 = vmatpush1.bf16.msra.mxu0 %v914
    %1012 = vmatprep.mubr.bf16.mxu0 %v669
    %1013 = vmatmul.mubr.bf16.gmra.mrb[0].mxu0 %v668
    %v1014 = vpop.f32.mrb[0].mxu0
    %v1015 = vadd.f32 %v733, %v1014
    %v1016 = vpop.f32.mrb[0].mxu0
    %v1017 = vadd.f32 %v737, %v1016
    %v1018 = vpop.f32.mrb[0].mxu0
    %v1019 = vpop.f32.mrb[0].mxu0
    %1020 = vdwg.mxu0
    %1021 = vmatprep.subr.bf16.mxu0 %v917
    %1022 = vmatpush1.bf16.msra.mxu0 %v916
    %1023 = vmatprep.subr.bf16.mxu0 %v919
    %1024 = vmatpush1.bf16.msra.mxu0 %v918
    %1025 = vmatprep.subr.bf16.mxu0 %v921
    %1026 = vmatpush1.bf16.msra.mxu0 %v920
    %1027 = vmatprep.subr.bf16.mxu0 %v923
    %1028 = vmatpush1.bf16.msra.mxu0 %v922
    %1029 = vmatprep.subr.bf16.mxu0 %v925
    %1030 = vmatpush1.bf16.msra.mxu0 %v924
    %1031 = vmatprep.subr.bf16.mxu0 %v927
    %1032 = vmatpush1.bf16.msra.mxu0 %v926
    %1033 = vmatprep.subr.bf16.mxu0 %v929
    %1034 = vmatpush1.bf16.msra.mxu0 %v928
    %1035 = vmatprep.subr.bf16.mxu0 %v931
    %1036 = vmatpush1.bf16.msra.mxu0 %v930
    %1037 = vmatprep.subr.bf16.mxu0 0
    %1038 = vmatpush1.bf16.msra.mxu0 0
    %1039 = vmatprep.subr.bf16.mxu0 0
    %1040 = vmatpush1.bf16.msra.mxu0 0
    %1041 = vmatprep.subr.bf16.mxu0 0
    %1042 = vmatpush1.bf16.msra.mxu0 0
    %1043 = vmatprep.subr.bf16.mxu0 0
    %1044 = vmatpush1.bf16.msra.mxu0 0
    %1045 = vmatprep.subr.bf16.mxu0 0
    %1046 = vmatpush1.bf16.msra.mxu0 0
    %1047 = vmatprep.subr.bf16.mxu0 0
    %1048 = vmatpush1.bf16.msra.mxu0 0
    %1049 = vmatprep.subr.bf16.mxu0 0
    %1050 = vmatpush1.bf16.msra.mxu0 0
    %1051 = vmatprep.subr.bf16.mxu0 0
    %1052 = vmatpush1.bf16.msra.mxu0 0
    %1053 = vmatprep.mubr.bf16.mxu0 0
    %1054 = vmatmul.mubr.bf16.gmra.mrb[0].mxu0 %v679
    %v1055 = vpop.f32.mrb[0].mxu0
    %v1056 = vadd.f32 %v1015, %v1055
    %v1057 = vpop.f32.mrb[0].mxu0
    %v1058 = vadd.f32 %v1017, %v1057
    %v1059 = vpop.f32.mrb[0].mxu0
    %v1060 = vpop.f32.mrb[0].mxu0
    %1061 = vdwg.mxu0
    %v1062 = vmax.f32 %v1056, 0.0
    %v1063 = vmax.f32 %v1058, 0.0
    %v1064 = vpack.c.bf16 %v1062, %v1062
    %v1065 = vpack.c.bf16 %v1063, %v1063
    %v1066 = vld [vmem:[#allocation8] sm:$0xf]
    %v1067 = vld [vmem:[#allocation8 + $0x4] sm:$0xf]
    %v1068 = vld [vmem:[#allocation8 + $0x8] sm:$0xf]
    %v1069 = vld [vmem:[#allocation8 + $0xc] sm:$0xf]
    %v1070 = vld [vmem:[#allocation8 + $0x10] sm:$0xf]
    %v1071 = vld [vmem:[#allocation8 + $0x14] sm:$0xf]
    %v1072 = vld [vmem:[#allocation8 + $0x18] sm:$0xf]
    %v1073 = vld [vmem:[#allocation8 + $0x1c] sm:$0xf]
    %v1074 = vld [vmem:[#allocation8 + $0x20] sm:$0xf]
    %v1075 = vld [vmem:[#allocation8 + $0x24] sm:$0xf]
    %v1076 = vld [vmem:[#allocation8 + $0x28] sm:$0xf]
    %v1077 = vld [vmem:[#allocation8 + $0x2c] sm:$0xf]
    %v1078 = vld [vmem:[#allocation8 + $0x30] sm:$0xf]
    %v1079 = vld [vmem:[#allocation8 + $0x34] sm:$0xf]
    %v1080 = vld [vmem:[#allocation8 + $0x38] sm:$0xf]
    %v1081 = vld [vmem:[#allocation8 + $0x3c] sm:$0xf]
    %v1082 = vld [vmem:[#allocation8 + $0x40] sm:$0xf]
    %v1083 = vld [vmem:[#allocation8 + $0x44] sm:$0xf]
    %v1084 = vld [vmem:[#allocation8 + $0x48] sm:$0xf]
    %v1085 = vld [vmem:[#allocation8 + $0x4c] sm:$0xf]
    %v1086 = vld [vmem:[#allocation8 + $0x50] sm:$0xf]
    %v1087 = vld [vmem:[#allocation8 + $0x54] sm:$0xf]
    %v1088 = vld [vmem:[#allocation8 + $0x58] sm:$0xf]
    %v1089 = vld [vmem:[#allocation8 + $0x5c] sm:$0xf]
    %v1090 = vld [vmem:[#allocation8 + $0x60] sm:$0xf]
    %v1091 = vld [vmem:[#allocation8 + $0x64] sm:$0xf]
    %v1092 = vld [vmem:[#allocation8 + $0x68] sm:$0xf]
    %v1093 = vld [vmem:[#allocation8 + $0x6c] sm:$0xf]
    %v1094 = vld [vmem:[#allocation8 + $0x70] sm:$0xf]
    %v1095 = vld [vmem:[#allocation8 + $0x74] sm:$0xf]
    %v1096 = vld [vmem:[#allocation8 + $0x78] sm:$0xf]
    %v1097 = vld [vmem:[#allocation8 + $0x7c] sm:$0xf]
    %v1098 = vld [vmem:[%s8] sm:$0x1]
    %v1100 = vlaneseq
    %v1101 = vshrl.u32 %v1100, 7
    %v1102 = vsub.s32 0, %v1101
    %v1103 = vrot.slane %v1098, %v1102
    %v1137 = vunpack.c.l.b16 %v1066
    %v1138 = vunpack.c.l.b16 %v1067
    %v1139 = vunpack.c.l.b16 %v1068
    %v1140 = vunpack.c.l.b16 %v1069
    %v1141 = vunpack.c.l.b16 %v1070
    %v1142 = vunpack.c.l.b16 %v1071
    %v1143 = vunpack.c.l.b16 %v1072
    %v1144 = vunpack.c.l.b16 %v1073
    %v1145 = vunpack.c.l.b16 %v1074
    %v1146 = vunpack.c.l.b16 %v1075
    %v1147 = vunpack.c.l.b16 %v1076
    %v1148 = vunpack.c.l.b16 %v1077
    %v1149 = vunpack.c.l.b16 %v1078
    %v1150 = vunpack.c.l.b16 %v1079
    %v1151 = vunpack.c.l.b16 %v1080
    %v1152 = vunpack.c.l.b16 %v1081
    %v1153 = vunpack.c.l.b16 %v1082
    %v1154 = vunpack.c.l.b16 %v1083
    %v1155 = vunpack.c.l.b16 %v1084
    %v1156 = vunpack.c.l.b16 %v1085
    %v1157 = vunpack.c.l.b16 %v1086
    %v1158 = vunpack.c.l.b16 %v1087
    %v1159 = vunpack.c.l.b16 %v1088
    %v1160 = vunpack.c.l.b16 %v1089
    %v1161 = vunpack.c.l.b16 %v1090
    %v1162 = vunpack.c.l.b16 %v1091
    %v1163 = vunpack.c.l.b16 %v1092
    %v1164 = vunpack.c.l.b16 %v1093
    %v1165 = vunpack.c.l.b16 %v1094
    %v1166 = vunpack.c.l.b16 %v1095
    %v1167 = vunpack.c.l.b16 %v1096
    %v1168 = vunpack.c.l.b16 %v1097
    %v1169 = vpack.c.b16 %v1138, %v1137
    %v1170 = vpack.c.b16 %v1140, %v1139
    %v1171 = vpack.c.b16 %v1142, %v1141
    %v1172 = vpack.c.b16 %v1144, %v1143
    %v1173 = vpack.c.b16 %v1146, %v1145
    %v1174 = vpack.c.b16 %v1148, %v1147
    %v1175 = vpack.c.b16 %v1150, %v1149
    %v1176 = vpack.c.b16 %v1152, %v1151
    %v1177 = vpack.c.b16 %v1154, %v1153
    %v1178 = vpack.c.b16 %v1156, %v1155
    %v1179 = vpack.c.b16 %v1158, %v1157
    %v1180 = vpack.c.b16 %v1160, %v1159
    %v1181 = vpack.c.b16 %v1162, %v1161
    %v1182 = vpack.c.b16 %v1164, %v1163
    %v1183 = vpack.c.b16 %v1166, %v1165
    %v1184 = vpack.c.b16 %v1168, %v1167
    %1201 = vmatprep.subr.bf16.mxu0 0
    %1202 = vmatpush1.bf16.msra.mxu0 %v1169
    %1203 = vmatprep.subr.bf16.mxu0 0
    %1204 = vmatpush1.bf16.msra.mxu0 %v1170
    %1205 = vmatprep.subr.bf16.mxu0 0
    %1206 = vmatpush1.bf16.msra.mxu0 %v1171
    %1207 = vmatprep.subr.bf16.mxu0 0
    %1208 = vmatpush1.bf16.msra.mxu0 %v1172
    %1209 = vmatprep.subr.bf16.mxu0 0
    %1210 = vmatpush1.bf16.msra.mxu0 %v1173
    %1211 = vmatprep.subr.bf16.mxu0 0
    %1212 = vmatpush1.bf16.msra.mxu0 %v1174
    %1213 = vmatprep.subr.bf16.mxu0 0
    %1214 = vmatpush1.bf16.msra.mxu0 %v1175
    %1215 = vmatprep.subr.bf16.mxu0 0
    %1216 = vmatpush1.bf16.msra.mxu0 %v1176
    %1217 = vmatprep.subr.bf16.mxu0 0
    %1218 = vmatpush1.bf16.msra.mxu0 %v1177
    %1219 = vmatprep.subr.bf16.mxu0 0
    %1220 = vmatpush1.bf16.msra.mxu0 %v1178
    %1221 = vmatprep.subr.bf16.mxu0 0
    %1222 = vmatpush1.bf16.msra.mxu0 %v1179
    %1223 = vmatprep.subr.bf16.mxu0 0
    %1224 = vmatpush1.bf16.msra.mxu0 %v1180
    %1225 = vmatprep.subr.bf16.mxu0 0
    %1226 = vmatpush1.bf16.msra.mxu0 %v1181
    %1227 = vmatprep.subr.bf16.mxu0 0
    %1228 = vmatpush1.bf16.msra.mxu0 %v1182
    %1229 = vmatprep.subr.bf16.mxu0 0
    %1230 = vmatpush1.bf16.msra.mxu0 %v1183
    %1231 = vmatprep.subr.bf16.mxu0 0
    %1232 = vmatpush1.bf16.msra.mxu0 %v1184
    %1233 = vmatprep.mubr.bf16.mxu0 %v1065
    %1234 = vmatmul.mubr.bf16.gmra.mrb[0].mxu0 %v1064
    %v1235 = vpop.f32.mrb[0].mxu0
    %v1236 = vadd.f32 %v1103, %v1235
    %v1237 = vpop.f32.mrb[0].mxu0
    %v1238 = vpop.f32.mrb[0].mxu0
    %v1239 = vpop.f32.mrb[0].mxu0
    %1240 = vdwg.mxu0
    %v1241 = vmax.f32 %v1236, 0.0
    %v1242 = vpack.c.bf16 %v1241, %v1241
    %v1243 = vld [vmem:[%s9] sm:$0xf]
    %v1244 = vld [vmem:[%s9 + $0x4] sm:$0xf]
    %v1245 = vld [vmem:[%s9 + $0x8] sm:$0xf]
    %v1246 = vld [vmem:[%s9 + $0xc] sm:$0xf]
    %v1247 = vld [vmem:[%s9 + $0x10] sm:$0xf]
    %v1248 = vld [vmem:[%s9 + $0x14] sm:$0xf]
    %v1249 = vld [vmem:[%s9 + $0x18] sm:$0xf]
    %v1250 = vld [vmem:[%s9 + $0x1c] sm:$0xf]
    %v1251 = vld [vmem:[%s9 + $0x20] sm:$0xf]
    %v1252 = vld [vmem:[%s9 + $0x24] sm:$0xf]
    %v1253 = vld [vmem:[%s9 + $0x28] sm:$0xf]
    %v1254 = vld [vmem:[%s9 + $0x2c] sm:$0xf]
    %v1255 = vld [vmem:[%s9 + $0x30] sm:$0xf]
    %v1256 = vld [vmem:[%s9 + $0x34] sm:$0xf]
    %v1257 = vld [vmem:[%s9 + $0x38] sm:$0xf]
    %v1258 = vld [vmem:[%s9 + $0x3c] sm:$0xf]
    %v1259 = vld [vmem:[%s10] sm:$0x1]
    %v1261 = vlaneseq
    %v1262 = vshrl.u32 %v1261, 7
    %v1263 = vsub.s32 0, %v1262
    %v1264 = vrot.slane %v1259, %v1263
    %v1282 = vunpack.c.l.b16 %v1243
    %v1283 = vunpack.c.l.b16 %v1244
    %v1284 = vunpack.c.l.b16 %v1245
    %v1285 = vunpack.c.l.b16 %v1246
    %v1286 = vunpack.c.l.b16 %v1247
    %v1287 = vunpack.c.l.b16 %v1248
    %v1288 = vunpack.c.l.b16 %v1249
    %v1289 = vunpack.c.l.b16 %v1250
    %v1290 = vunpack.c.l.b16 %v1251
    %v1291 = vunpack.c.l.b16 %v1252
    %v1292 = vunpack.c.l.b16 %v1253
    %v1293 = vunpack.c.l.b16 %v1254
    %v1294 = vunpack.c.l.b16 %v1255
    %v1295 = vunpack.c.l.b16 %v1256
    %v1296 = vunpack.c.l.b16 %v1257
    %v1297 = vunpack.c.l.b16 %v1258
    %v1298 = vpack.c.b16 %v1283, %v1282
    %v1299 = vpack.c.b16 %v1285, %v1284
    %v1300 = vpack.c.b16 %v1287, %v1286
    %v1301 = vpack.c.b16 %v1289, %v1288
    %v1302 = vpack.c.b16 %v1291, %v1290
    %v1303 = vpack.c.b16 %v1293, %v1292
    %v1304 = vpack.c.b16 %v1295, %v1294
    %v1305 = vpack.c.b16 %v1297, %v1296
    %1314 = vmatprep.subr.bf16.mxu0 0
    %1315 = vmatpush1.bf16.msra.mxu0 %v1298
    %1316 = vmatprep.subr.bf16.mxu0 0
    %1317 = vmatpush1.bf16.msra.mxu0 %v1299
    %1318 = vmatprep.subr.bf16.mxu0 0
    %1319 = vmatpush1.bf16.msra.mxu0 %v1300
    %1320 = vmatprep.subr.bf16.mxu0 0
    %1321 = vmatpush1.bf16.msra.mxu0 %v1301
    %1322 = vmatprep.subr.bf16.mxu0 0
    %1323 = vmatpush1.bf16.msra.mxu0 %v1302
    %1324 = vmatprep.subr.bf16.mxu0 0
    %1325 = vmatpush1.bf16.msra.mxu0 %v1303
    %1326 = vmatprep.subr.bf16.mxu0 0
    %1327 = vmatpush1.bf16.msra.mxu0 %v1304
    %1328 = vmatprep.subr.bf16.mxu0 0
    %1329 = vmatpush1.bf16.msra.mxu0 %v1305
    %1330 = vmatprep.subr.bf16.mxu0 0
    %1331 = vmatpush1.bf16.msra.mxu0 0
    %1332 = vmatprep.subr.bf16.mxu0 0
    %1333 = vmatpush1.bf16.msra.mxu0 0
    %1334 = vmatprep.subr.bf16.mxu0 0
    %1335 = vmatpush1.bf16.msra.mxu0 0
    %1336 = vmatprep.subr.bf16.mxu0 0
    %1337 = vmatpush1.bf16.msra.mxu0 0
    %1338 = vmatprep.subr.bf16.mxu0 0
    %1339 = vmatpush1.bf16.msra.mxu0 0
    %1340 = vmatprep.subr.bf16.mxu0 0
    %1341 = vmatpush1.bf16.msra.mxu0 0
    %1342 = vmatprep.subr.bf16.mxu0 0
    %1343 = vmatpush1.bf16.msra.mxu0 0
    %1344 = vmatprep.subr.bf16.mxu0 0
    %1345 = vmatpush1.bf16.msra.mxu0 0
    %1346 = vmatprep.mubr.bf16.mxu0 0
    %1347 = vmatmul.mubr.bf16.gmra.mrb[0].mxu0 %v1242
    %v1348 = vpop.f32.mrb[0].mxu0
    %v1349 = vadd.f32 %v1264, %v1348
    %v1350 = vpop.f32.mrb[0].mxu0
    %v1351 = vpop.f32.mrb[0].mxu0
    %v1352 = vpop.f32.mrb[0].mxu0
    %1353 = vdwg.mxu0
    %v1354 = vmax.f32 %v1349, 0.0
    %v1355 = vpack.c.bf16 %v1354, %v1354
    %v1356 = vld [vmem:[%s11] sm:$0xf]
    %v1357 = vld [vmem:[%s11 + $0x4] sm:$0xf]
    %v1358 = vld [vmem:[%s11 + $0x8] sm:$0xf]
    %v1359 = vld [vmem:[%s11 + $0xc] sm:$0xf]
    %v1360 = vld [vmem:[%s11 + $0x10] sm:$0xf]
    %v1361 = vld [vmem:[%s11 + $0x14] sm:$0xf]
    %v1362 = vld [vmem:[%s11 + $0x18] sm:$0xf]
    %v1363 = vld [vmem:[%s11 + $0x1c] sm:$0xf]
    %v1364 = vld [vmem:[%s11 + $0x20] sm:$0xf]
    %v1365 = vld [vmem:[%s11 + $0x24] sm:$0xf]
    %v1366 = vld [vmem:[%s11 + $0x28] sm:$0xf]
    %v1367 = vld [vmem:[%s11 + $0x2c] sm:$0xf]
    %v1368 = vld [vmem:[%s11 + $0x30] sm:$0xf]
    %v1369 = vld [vmem:[%s11 + $0x34] sm:$0xf]
    %v1370 = vld [vmem:[%s11 + $0x38] sm:$0xf]
    %v1371 = vld [vmem:[%s11 + $0x3c] sm:$0xf]
    %v1372 = vld [vmem:[%s12] sm:$0x1]
    %v1374 = vlaneseq
    %v1375 = vshrl.u32 %v1374, 7
    %v1376 = vsub.s32 0, %v1375
    %v1377 = vrot.slane %v1372, %v1376
    %v1395 = vunpack.c.l.b16 %v1356
    %v1396 = vunpack.c.l.b16 %v1357
    %v1397 = vunpack.c.l.b16 %v1358
    %v1398 = vunpack.c.l.b16 %v1359
    %v1399 = vunpack.c.l.b16 %v1360
    %v1400 = vunpack.c.l.b16 %v1361
    %v1401 = vunpack.c.l.b16 %v1362
    %v1402 = vunpack.c.l.b16 %v1363
    %v1403 = vunpack.c.l.b16 %v1364
    %v1404 = vunpack.c.l.b16 %v1365
    %v1405 = vunpack.c.l.b16 %v1366
    %v1406 = vunpack.c.l.b16 %v1367
    %v1407 = vunpack.c.l.b16 %v1368
    %v1408 = vunpack.c.l.b16 %v1369
    %v1409 = vunpack.c.l.b16 %v1370
    %v1410 = vunpack.c.l.b16 %v1371
    %v1411 = vpack.c.b16 %v1396, %v1395
    %v1412 = vpack.c.b16 %v1398, %v1397
    %v1413 = vpack.c.b16 %v1400, %v1399
    %v1414 = vpack.c.b16 %v1402, %v1401
    %v1415 = vpack.c.b16 %v1404, %v1403
    %v1416 = vpack.c.b16 %v1406, %v1405
    %v1417 = vpack.c.b16 %v1408, %v1407
    %v1418 = vpack.c.b16 %v1410, %v1409
    %1427 = vmatprep.subr.bf16.mxu0 0
    %1428 = vmatpush1.bf16.msra.mxu0 %v1411
    %1429 = vmatprep.subr.bf16.mxu0 0
    %1430 = vmatpush1.bf16.msra.mxu0 %v1412
    %1431 = vmatprep.subr.bf16.mxu0 0
    %1432 = vmatpush1.bf16.msra.mxu0 %v1413
    %1433 = vmatprep.subr.bf16.mxu0 0
    %1434 = vmatpush1.bf16.msra.mxu0 %v1414
    %1435 = vmatprep.subr.bf16.mxu0 0
    %1436 = vmatpush1.bf16.msra.mxu0 %v1415
    %1437 = vmatprep.subr.bf16.mxu0 0
    %1438 = vmatpush1.bf16.msra.mxu0 %v1416
    %1439 = vmatprep.subr.bf16.mxu0 0
    %1440 = vmatpush1.bf16.msra.mxu0 %v1417
    %1441 = vmatprep.subr.bf16.mxu0 0
    %1442 = vmatpush1.bf16.msra.mxu0 %v1418
    %1443 = vmatprep.subr.bf16.mxu0 0
    %1444 = vmatpush1.bf16.msra.mxu0 0
    %1445 = vmatprep.subr.bf16.mxu0 0
    %1446 = vmatpush1.bf16.msra.mxu0 0
    %1447 = vmatprep.subr.bf16.mxu0 0
    %1448 = vmatpush1.bf16.msra.mxu0 0
    %1449 = vmatprep.subr.bf16.mxu0 0
    %1450 = vmatpush1.bf16.msra.mxu0 0
    %1451 = vmatprep.subr.bf16.mxu0 0
    %1452 = vmatpush1.bf16.msra.mxu0 0
    %1453 = vmatprep.subr.bf16.mxu0 0
    %1454 = vmatpush1.bf16.msra.mxu0 0
    %1455 = vmatprep.subr.bf16.mxu0 0
    %1456 = vmatpush1.bf16.msra.mxu0 0
    %1457 = vmatprep.subr.bf16.mxu0 0
    %1458 = vmatpush1.bf16.msra.mxu0 0
    %1459 = vmatprep.mubr.bf16.mxu0 0
    %1460 = vmatmul.mubr.bf16.gmra.mrb[0].mxu0 %v1355
    %v1461 = vpop.f32.mrb[0].mxu0
    %v1462 = vadd.f32 %v1377, %v1461
    %v1463 = vpop.f32.mrb[0].mxu0
    %v1464 = vpop.f32.mrb[0].mxu0
    %v1465 = vpop.f32.mrb[0].mxu0
    %1466 = vdwg.mxu0
    %vm1467 = vcmask 523264
    %1468 = vst.msk [vmem:[#allocation10] sm:$0xff] %vm1467, %v1462
    // Predicated region
    $region70: #{tpu_custom_call.1} parent=1 // pred_check
      _
    $region71: #{tpu_custom_call.1} parent=1 // pred_check_branch
      %1470 = sbr.rel (0) target = $region73
    $region72: #{tpu_custom_call.1} parent=1 // pred_region
      %s1472 = ssub.s32 128, 128
      %1473 = vsyncadd [#allocation4], %s1472
      %s1475 = sshll.u32 [#allocation10], 4
      %s1476 = int_to_ptr.vmem [resolvable:$true] %s1475
      %1478 = dma.vmem_to_hbm [thread:$0]  %s1476, 128, %s13, [#allocation4]
    $region73: #{tpu_custom_call.1} parent=1 // pred_fallthru
      _
    // Predicated region
    $region74: #{tpu_custom_call.1} parent=1 // pred_check
      _
    $region75: #{tpu_custom_call.1} parent=1 // pred_check_branch
      %1480 = sbr.rel (0) target = $region77
    $region76: #{tpu_custom_call.1} parent=1 // pred_region
      %1481 = dma.done [#allocation4], 128
    $region77: #{tpu_custom_call.1} parent=1 // pred_fallthru
      _
    %1482 = vsyncpa [#allocation3], 1
    %1483 = vsyncpa [#allocation6], 1
    %1484 = vsyncpa [#allocation9], 1
    %1485 = vsyncpa [#allocation4], 1

</llo_original>
